<compile_context>
chip_gen: v6e
topology: v6e:2x2x1
jax: 0.10.0
libtpu: 0.0.40
codegen_flags: <defaults>
</compile_context>

<pallas_src>
import functools

import jax
import jax.numpy as jnp
from jax.experimental import pallas as pl
from jax.experimental.pallas import tpu as pltpu


# ----------------------------- config -------------------------------------
class Config:
    hidden_size = 32
    intermediate_size = 64
    num_attention_heads = 4
    num_hidden_layers = 2
    layer_norm_eps = 1e-6
    attention_dropout = 0.0  # eval mode -> dropout is identity


# MXU operand dtype (accumulation is always f32). Set to jnp.float32 for exact
# f32 parity with the PyTorch reference (bf16 gives ~1e-3 relative differences).
MATMUL_DTYPE = jnp.bfloat16

# Intermediate-dim tile for the MLP (clamped to I; at the toy config this is a
# single tile, at real SigLIP dims (I=4304) it bounds the live (S, tile) f32
# intermediates).
MLP_TILE = 2048


# ----------------------------- kernel helpers -------------------------------
def _layer_norm(x, gamma, beta, eps):
    mu = jnp.mean(x, axis=-1, keepdims=True)
    var = jnp.mean((x - mu) * (x - mu), axis=-1, keepdims=True)
    return (x - mu) * jax.lax.rsqrt(var + eps) * gamma + beta


def _gelu_tanh(x):
    # F.gelu(..., approximate='tanh')
    c = 0.7978845608028654  # sqrt(2/pi)
    return 0.5 * x * (1.0 + jnp.tanh(c * (x + 0.044715 * x * x * x)))


# ----------------------------- fused encoder kernel -------------------------
def encoder_kernel(
    # inputs
    x_ref,
    ln1_g_ref, ln1_b_ref,
    wqkv_ref, bqkv_ref, wo_ref, bo_ref,
    ln2_g_ref, ln2_b_ref,
    w1_ref, b1_ref, w2_ref, b2_ref,
    # output (doubles as the VMEM-resident activation carry across layers)
    o_ref,
    *, num_heads, eps,
):
    """One grid step == one encoder layer applied to one batch element (S, D)."""
    layer = pl.program_id(1)

    # Layer 0: seed the activation carry (output block is resident across the
    # layer axis because its block index does not depend on it).
    @pl.when(layer == 0)
    def _():
        o_ref[...] = x_ref[...]

    x = o_ref[0]                      # (S, D) float32 activations for this batch element
    S, D = x.shape
    H = num_heads
    hd = D // H

    # ---------------- LayerNorm 1 (f32) ----------------
    xn = _layer_norm(x, ln1_g_ref[0], ln1_b_ref[0], eps)
    xn_b = xn.astype(MATMUL_DTYPE)

    # ---------------- fused QKV projection: one lane-dense (S,D)x(D,3D) matmul
    # (attention scale already folded into the Q columns / bias).
    qkv = jnp.dot(xn_b, wqkv_ref[0], preferred_element_type=jnp.float32) + bqkv_ref[0]

    # ---------------- attention: per-head score/softmax/context ---------------
    # Attention is strictly within this batch element, so no mask is required.
    # Only one (S, S) f32 score tile is live at a time.
    # TODO(synk): for much longer sequences, add a key-block online-softmax loop
    # (flash-style) inside this per-head loop.
    ctx_parts = []
    for h in range(H):
        q_h = qkv[:, h * hd:(h + 1) * hd].astype(MATMUL_DTYPE)              # (S, hd)
        k_h = qkv[:, D + h * hd:D + (h + 1) * hd].astype(MATMUL_DTYPE)      # (S, hd)
        v_h = qkv[:, 2 * D + h * hd:2 * D + (h + 1) * hd].astype(MATMUL_DTYPE)
        s = jnp.einsum('qe,ke->qk', q_h, k_h,
                       preferred_element_type=jnp.float32)                  # (S, S)
        m = jnp.max(s, axis=-1, keepdims=True)
        p = jnp.exp(s - m)
        p = p * pl.reciprocal(jnp.sum(p, axis=-1, keepdims=True), approx=True)
        # attention_dropout: p=0.0 / eval mode -> identity (no-op).
        ctx_parts.append(jnp.dot(p.astype(MATMUL_DTYPE), v_h,
                                 preferred_element_type=jnp.float32))       # (S, hd)
    ctx = jnp.concatenate(ctx_parts, axis=-1)                               # (S, D)

    # ---------------- output projection: one lane-dense (S,D)x(D,D) matmul ----
    attn = jnp.dot(ctx.astype(MATMUL_DTYPE), wo_ref[0],
                   preferred_element_type=jnp.float32) + bo_ref[0]

    # ---------------- residual 1 ----------------
    x1 = x + attn

    # ---------------- LayerNorm 2 + MLP (tiled over intermediate dim) ---------
    xn2 = _layer_norm(x1, ln2_g_ref[0], ln2_b_ref[0], eps)
    xn2_b = xn2.astype(MATMUL_DTYPE)
    w1 = w1_ref[0]            # (D, I) bf16
    b1 = b1_ref[0]            # (1, I) f32
    w2 = w2_ref[0]            # (I, D) bf16
    I = w1.shape[-1]
    it = I if (I <= MLP_TILE or I % MLP_TILE != 0) else MLP_TILE
    mlp = jnp.zeros((S, D), jnp.float32)
    for t in range(I // it):
        h1_t = jnp.dot(xn2_b, w1[:, t * it:(t + 1) * it],
                       preferred_element_type=jnp.float32) + b1[:, t * it:(t + 1) * it]
        g_t = _gelu_tanh(h1_t)
        mlp = mlp + jnp.dot(g_t.astype(MATMUL_DTYPE), w2[t * it:(t + 1) * it, :],
                            preferred_element_type=jnp.float32)
    mlp = mlp + b2_ref[0]

    # ---------------- residual 2: write back into the carry -------------------
    o_ref[0] = x1 + mlp


# ----------------------------- parameters -----------------------------------
def init_layer_params(key, D, I):
    ks = jax.random.split(key, 6)
    std = 0.02
    return {
        "ln1_g": jnp.ones((1, D), jnp.float32),
        "ln1_b": jnp.zeros((1, D), jnp.float32),
        # stored as (in, out) == PyTorch Linear weight transposed
        "wq": std * jax.random.normal(ks[0], (D, D), jnp.float32),
        "bq": jnp.zeros((1, D), jnp.float32),
        "wk": std * jax.random.normal(ks[1], (D, D), jnp.float32),
        "bk": jnp.zeros((1, D), jnp.float32),
        "wv": std * jax.random.normal(ks[2], (D, D), jnp.float32),
        "bv": jnp.zeros((1, D), jnp.float32),
        "wo": std * jax.random.normal(ks[3], (D, D), jnp.float32),
        "bo": jnp.zeros((1, D), jnp.float32),
        "ln2_g": jnp.ones((1, D), jnp.float32),
        "ln2_b": jnp.zeros((1, D), jnp.float32),
        "w1": std * jax.random.normal(ks[4], (D, I), jnp.float32),
        "b1": jnp.zeros((1, I), jnp.float32),
        "w2": std * jax.random.normal(ks[5], (I, D), jnp.float32),
        "b2": jnp.zeros((1, D), jnp.float32),
    }


def prepare_stacked_params(layer_params, num_heads):
    """One-time host-side prep: stack per-layer weights on a leading L axis,
    fuse q/k/v into a single (D, 3D) weight (scale folded into the Q part),
    and cast matmul weights to the MXU operand dtype."""
    D = layer_params[0]["wq"].shape[0]
    hd = D // num_heads
    scale = hd ** (-0.5)
    dt = MATMUL_DTYPE

    def stack(name):
        return jnp.stack([p[name] for p in layer_params], axis=0)

    wq, wk, wv = stack("wq"), stack("wk"), stack("wv")
    bq, bk, bv = stack("bq"), stack("bk"), stack("bv")
    wqkv = jnp.concatenate([wq * scale, wk, wv], axis=-1)   # (L, D, 3D)
    bqkv = jnp.concatenate([bq * scale, bk, bv], axis=-1)   # (L, 1, 3D)

    return {
        "ln1_g": stack("ln1_g"), "ln1_b": stack("ln1_b"),
        "wqkv": wqkv.astype(dt), "bqkv": bqkv,
        "wo": stack("wo").astype(dt), "bo": stack("bo"),
        "ln2_g": stack("ln2_g"), "ln2_b": stack("ln2_b"),
        "w1": stack("w1").astype(dt), "b1": stack("b1"),
        "w2": stack("w2").astype(dt), "b2": stack("b2"),
    }


# ----------------------------- wrapper --------------------------------------
def _vmem_limit_bytes(S, D, I, H):
    """Explicit scoped-VMEM limit, sized from the actual buffers with headroom."""
    bf16, f32 = 2, 4
    w_layer = bf16 * (3 * D * D + D * D + 2 * D * I) + f32 * (3 * D + 5 * D + I)
    blocks = 2 * w_layer + 3 * f32 * S * D           # dbl-buffered weights + x + carry
    it = I if (I <= MLP_TILE or I % MLP_TILE != 0) else MLP_TILE
    interm = f32 * (3 * S * D + S * S + 2 * S * it + 4 * S * D)
    est = blocks + interm
    return int(min(max(2 * est + (4 << 20), 32 << 20), 96 << 20))


def siglip_vision_encoder(hidden_states, stacked, config):
    B, S, D = hidden_states.shape
    I = config.intermediate_size
    H = config.num_attention_heads
    L = stacked["wqkv"].shape[0]
    eps = config.layer_norm_eps
    assert D % H == 0

    kernel = functools.partial(encoder_kernel, num_heads=H, eps=eps)

    def per_batch(shape):   # activation block, indexed by batch only
        return pl.BlockSpec((1,) + shape, lambda bi, li: (bi, 0, 0))

    def per_layer(shape):   # per-layer weight block, indexed by layer only
        return pl.BlockSpec((1,) + shape, lambda bi, li: (li, 0, 0))

    in_specs = [
        per_batch((S, D)),                                  # x
        per_layer((1, D)), per_layer((1, D)),               # ln1 gamma, beta
        per_layer((D, 3 * D)), per_layer((1, 3 * D)),       # fused qkv weight, bias
        per_layer((D, D)), per_layer((1, D)),               # out proj weight, bias
        per_layer((1, D)), per_layer((1, D)),               # ln2 gamma, beta
        per_layer((D, I)), per_layer((1, I)),               # fc1
        per_layer((I, D)), per_layer((1, D)),               # fc2
    ]

    # Advisory cost estimate (helps XLA schedule around the fused custom call).
    flops = 2 * L * B * S * (4 * D * D + 2 * S * D + 2 * D * I)
    transcendentals = L * B * (H * S * S + S * I)
    w_layer_bytes = 2 * (3 * D * D + D * D + 2 * D * I) + 4 * (3 * D + 5 * D + I)
    bytes_accessed = 2 * B * S * D * 4 + B * L * w_layer_bytes

    call = pl.pallas_call(
        kernel,
        out_shape=jax.ShapeDtypeStruct((B, S, D), jnp.float32),
        grid_spec=pltpu.PrefetchScalarGridSpec(
            num_scalar_prefetch=0,
            grid=(B, L),                                    # batch (parallel) x layer (carried)
            in_specs=in_specs,
            out_specs=pl.BlockSpec((1, S, D), lambda bi, li: (bi, 0, 0)),
        ),
        compiler_params=pltpu.CompilerParams(
            dimension_semantics=("parallel", "arbitrary"),
            vmem_limit_bytes=_vmem_limit_bytes(S, D, I, H),
        ),
        cost_estimate=pl.CostEstimate(
            flops=int(flops),
            transcendentals=int(transcendentals),
            bytes_accessed=int(bytes_accessed),
        ),
        # TODO(synk): at real SigLIP dims on v7x (64 MiB VMEM), stream the fc1/fc2
        # weights in (D, tile) slabs (nested emit_pipeline) instead of keeping the
        # whole per-layer weight set resident.
    )

    return call(
        hidden_states,
        stacked["ln1_g"], stacked["ln1_b"],
        stacked["wqkv"], stacked["bqkv"], stacked["wo"], stacked["bo"],
        stacked["ln2_g"], stacked["ln2_b"],
        stacked["w1"], stacked["b1"], stacked["w2"], stacked["b2"],
    )


# ----------------------------- main -----------------------------------------
if __name__ == "__main__":
    cfg = Config()
    B, S, D = 2, 8, cfg.hidden_size

    key = jax.random.PRNGKey(0)
    k_x, *k_layers = jax.random.split(key, 1 + cfg.num_hidden_layers)

    hidden_states = jax.random.normal(k_x, (B, S, D), jnp.float32)
    params = [init_layer_params(k, D, cfg.intermediate_size) for k in k_layers]
    stacked = prepare_stacked_params(params, cfg.num_attention_heads)

    out = siglip_vision_encoder(hidden_states, stacked, cfg)
    out = jax.block_until_ready(out)
    assert out.shape == (B, S, D)
    print("KERNEL_OK")
</pallas_src>

<mosaic_0001>
module attributes {stable_mosaic.version = 11 : i64} {
  func.func @encoder_kernel(%arg0: i32, %arg1: i32, %arg2: memref<1x8x32xf32, #tpu.memory_space<vmem>>, %arg3: memref<1x1x32xf32, #tpu.memory_space<vmem>>, %arg4: memref<1x1x32xf32, #tpu.memory_space<vmem>>, %arg5: memref<1x32x96xbf16, #tpu.memory_space<vmem>>, %arg6: memref<1x1x96xf32, #tpu.memory_space<vmem>>, %arg7: memref<1x32x32xbf16, #tpu.memory_space<vmem>>, %arg8: memref<1x1x32xf32, #tpu.memory_space<vmem>>, %arg9: memref<1x1x32xf32, #tpu.memory_space<vmem>>, %arg10: memref<1x1x32xf32, #tpu.memory_space<vmem>>, %arg11: memref<1x32x64xbf16, #tpu.memory_space<vmem>>, %arg12: memref<1x1x64xf32, #tpu.memory_space<vmem>>, %arg13: memref<1x64x32xbf16, #tpu.memory_space<vmem>>, %arg14: memref<1x1x32xf32, #tpu.memory_space<vmem>>, %arg15: memref<1x8x32xf32, #tpu.memory_space<vmem>>) attributes {dimension_semantics = [#tpu.dimension_semantics<parallel>, #tpu.dimension_semantics<arbitrary>], iteration_bounds = array<i64: 2, 2>, scalar_prefetch = 0 : i64, scratch_operands = 0 : i64, tpu.core_type = #tpu.core_type<tc>, window_params = [{transform_indices = @transform_0, window_bounds = array<i64: 1, 8, 32>}, {transform_indices = @transform_1, window_bounds = array<i64: 1, 1, 32>}, {transform_indices = @transform_2, window_bounds = array<i64: 1, 1, 32>}, {transform_indices = @transform_3, window_bounds = array<i64: 1, 32, 96>}, {transform_indices = @transform_4, window_bounds = array<i64: 1, 1, 96>}, {transform_indices = @transform_5, window_bounds = array<i64: 1, 32, 32>}, {transform_indices = @transform_6, window_bounds = array<i64: 1, 1, 32>}, {transform_indices = @transform_7, window_bounds = array<i64: 1, 1, 32>}, {transform_indices = @transform_8, window_bounds = array<i64: 1, 1, 32>}, {transform_indices = @transform_9, window_bounds = array<i64: 1, 32, 64>}, {transform_indices = @transform_10, window_bounds = array<i64: 1, 1, 64>}, {transform_indices = @transform_11, window_bounds = array<i64: 1, 64, 32>}, {transform_indices = @transform_12, window_bounds = array<i64: 1, 1, 32>}, {transform_indices = @transform_13, window_bounds = array<i64: 1, 8, 32>}]} {
    %c0_i32 = arith.constant 0 : i32
    %0 = arith.cmpi eq, %arg1, %c0_i32 : i32
    %1 = arith.extui %0 : i1 to i32
    %c0_i32_0 = arith.constant 0 : i32
    %2 = arith.cmpi ne, %1, %c0_i32_0 : i32
    scf.if %2 {
      %c0_76 = arith.constant 0 : index
      %c0_77 = arith.constant 0 : index
      %c0_78 = arith.constant 0 : index
      %190 = vector.load %arg2[%c0_76, %c0_77, %c0_78] : memref<1x8x32xf32, #tpu.memory_space<vmem>>, vector<1x8x32xf32>
      %c0_79 = arith.constant 0 : index
      %c0_80 = arith.constant 0 : index
      %c0_81 = arith.constant 0 : index
      %191 = vector.load %arg15[%c0_79, %c0_80, %c0_81] : memref<1x8x32xf32, #tpu.memory_space<vmem>>, vector<1x8x32xf32>
      tpu.vector_store %arg15[%c0_79, %c0_80, %c0_81], %190 {strides = array<i32>} : memref<1x8x32xf32, #tpu.memory_space<vmem>>, vector<1x8x32xf32>,
    } else {
    }
    %c0 = arith.constant 0 : index
    %c0_1 = arith.constant 0 : index
    %c0_2 = arith.constant 0 : index
    %3 = vector.load %arg15[%c0, %c0_1, %c0_2] : memref<1x8x32xf32, #tpu.memory_space<vmem>>, vector<1x8x32xf32>
    %4 = vector.shape_cast %3 : vector<1x8x32xf32> to vector<8x32xf32>
    %c0_3 = arith.constant 0 : index
    %c0_4 = arith.constant 0 : index
    %c0_5 = arith.constant 0 : index
    %5 = vector.load %arg3[%c0_3, %c0_4, %c0_5] : memref<1x1x32xf32, #tpu.memory_space<vmem>>, vector<1x1x32xf32>
    %6 = vector.shape_cast %5 : vector<1x1x32xf32> to vector<1x32xf32>
    %c0_6 = arith.constant 0 : index
    %c0_7 = arith.constant 0 : index
    %c0_8 = arith.constant 0 : index
    %7 = vector.load %arg4[%c0_6, %c0_7, %c0_8] : memref<1x1x32xf32, #tpu.memory_space<vmem>>, vector<1x1x32xf32>
    %8 = vector.shape_cast %7 : vector<1x1x32xf32> to vector<1x32xf32>
    %cst = arith.constant dense<0.000000e+00> : vector<8xf32>
    %9 = vector.multi_reduction <add>, %4, %cst [1] : vector<8x32xf32> to vector<8xf32>
    %10 = vector.shape_cast %9 : vector<8xf32> to vector<8x1xf32>
    %cst_9 = arith.constant 3.200000e+01 : f32
    %11 = vector.broadcast %cst_9 : f32 to vector<8x1xf32>
    %12 = arith.divf %10, %11 : vector<8x1xf32>
    %13 = vector.broadcast %12 : vector<8x1xf32> to vector<8x32xf32>
    %14 = arith.subf %4, %13 : vector<8x32xf32>
    %15 = vector.broadcast %12 : vector<8x1xf32> to vector<8x32xf32>
    %16 = arith.subf %4, %15 : vector<8x32xf32>
    %17 = arith.mulf %14, %16 : vector<8x32xf32>
    %cst_10 = arith.constant dense<0.000000e+00> : vector<8xf32>
    %18 = vector.multi_reduction <add>, %17, %cst_10 [1] : vector<8x32xf32> to vector<8xf32>
    %19 = vector.shape_cast %18 : vector<8xf32> to vector<8x1xf32>
    %cst_11 = arith.constant 3.200000e+01 : f32
    %20 = vector.broadcast %cst_11 : f32 to vector<8x1xf32>
    %21 = arith.divf %19, %20 : vector<8x1xf32>
    %22 = vector.broadcast %12 : vector<8x1xf32> to vector<8x32xf32>
    %23 = arith.subf %4, %22 : vector<8x32xf32>
    %cst_12 = arith.constant 9.99999997E-7 : f32
    %24 = vector.broadcast %cst_12 : f32 to vector<8x1xf32>
    %25 = arith.addf %21, %24 : vector<8x1xf32>
    %26 = math.rsqrt %25 : vector<8x1xf32>
    %27 = vector.broadcast %26 : vector<8x1xf32> to vector<8x32xf32>
    %28 = arith.mulf %23, %27 : vector<8x32xf32>
    %29 = vector.broadcast %6 : vector<1x32xf32> to vector<8x32xf32>
    %30 = arith.mulf %28, %29 : vector<8x32xf32>
    %31 = vector.broadcast %8 : vector<1x32xf32> to vector<8x32xf32>
    %32 = arith.addf %30, %31 : vector<8x32xf32>
    %33 = arith.truncf %32 : vector<8x32xf32> to vector<8x32xbf16>
    %c0_13 = arith.constant 0 : index
    %c0_14 = arith.constant 0 : index
    %c0_15 = arith.constant 0 : index
    %34 = vector.load %arg5[%c0_13, %c0_14, %c0_15] : memref<1x32x96xbf16, #tpu.memory_space<vmem>>, vector<1x32x96xbf16>
    %35 = vector.shape_cast %34 : vector<1x32x96xbf16> to vector<32x96xbf16>
    %cst_16 = arith.constant dense<0.000000e+00> : vector<8x96xf32>
    %36 = tpu.matmul %33, %35, %cst_16 {dimension_numbers = #tpu.dot_dimension_numbers<[1], [0], [0], [1], [0, 0, 1, 1], [], []>} : vector<8x32xbf16>, vector<32x96xbf16>, vector<8x96xf32> -> vector<8x96xf32>
    %c0_17 = arith.constant 0 : index
    %c0_18 = arith.constant 0 : index
    %c0_19 = arith.constant 0 : index
    %37 = vector.load %arg6[%c0_17, %c0_18, %c0_19] : memref<1x1x96xf32, #tpu.memory_space<vmem>>, vector<1x1x96xf32>
    %38 = vector.shape_cast %37 : vector<1x1x96xf32> to vector<1x96xf32>
    %39 = vector.broadcast %38 : vector<1x96xf32> to vector<8x96xf32>
    %40 = arith.addf %36, %39 : vector<8x96xf32>
    %41 = vector.extract_strided_slice %40 {offsets = [0, 0], sizes = [8, 8], strides = [1, 1]} : vector<8x96xf32> to vector<8x8xf32>
    %42 = arith.truncf %41 : vector<8x8xf32> to vector<8x8xbf16>
    %43 = vector.extract_strided_slice %40 {offsets = [0, 32], sizes = [8, 8], strides = [1, 1]} : vector<8x96xf32> to vector<8x8xf32>
    %44 = arith.truncf %43 : vector<8x8xf32> to vector<8x8xbf16>
    %45 = vector.extract_strided_slice %40 {offsets = [0, 64], sizes = [8, 8], strides = [1, 1]} : vector<8x96xf32> to vector<8x8xf32>
    %46 = arith.truncf %45 : vector<8x8xf32> to vector<8x8xbf16>
    "tpu.trace_start"() <{level = 10 : i32, message = "qe,ke->qk"}> : () -> ()
    %cst_20 = arith.constant dense<0.000000e+00> : vector<8x8xf32>
    %47 = tpu.matmul %42, %44, %cst_20 {dimension_numbers = #tpu.dot_dimension_numbers<[1], [1], [0], [0], [0, 0, 1, 0], [], []>} : vector<8x8xbf16>, vector<8x8xbf16>, vector<8x8xf32> -> vector<8x8xf32>
    "tpu.trace_stop"() : () -> ()
    %cst_21 = arith.constant dense<0xFF800000> : vector<8xf32>
    %48 = vector.multi_reduction <maximumf>, %47, %cst_21 [1] : vector<8x8xf32> to vector<8xf32>
    %49 = vector.shape_cast %48 : vector<8xf32> to vector<8x1xf32>
    %50 = vector.broadcast %49 : vector<8x1xf32> to vector<8x8xf32>
    %51 = arith.subf %47, %50 : vector<8x8xf32>
    %52 = math.exp %51 : vector<8x8xf32>
    %cst_22 = arith.constant dense<0.000000e+00> : vector<8xf32>
    %53 = vector.multi_reduction <add>, %52, %cst_22 [1] : vector<8x8xf32> to vector<8xf32>
    %54 = vector.shape_cast %53 : vector<8xf32> to vector<8x1xf32>
    %55 = tpu.reciprocal %54 {approx = true} : vector<8x1xf32> -> vector<8x1xf32>
    %56 = vector.broadcast %55 : vector<8x1xf32> to vector<8x8xf32>
    %57 = arith.mulf %52, %56 : vector<8x8xf32>
    %58 = arith.truncf %57 : vector<8x8xf32> to vector<8x8xbf16>
    %cst_23 = arith.constant dense<0.000000e+00> : vector<8x8xf32>
    %59 = tpu.matmul %58, %46, %cst_23 {dimension_numbers = #tpu.dot_dimension_numbers<[1], [0], [0], [1], [0, 0, 1, 1], [], []>} : vector<8x8xbf16>, vector<8x8xbf16>, vector<8x8xf32> -> vector<8x8xf32>
    %60 = vector.extract_strided_slice %40 {offsets = [0, 8], sizes = [8, 8], strides = [1, 1]} : vector<8x96xf32> to vector<8x8xf32>
    %61 = arith.truncf %60 : vector<8x8xf32> to vector<8x8xbf16>
    %62 = vector.extract_strided_slice %40 {offsets = [0, 40], sizes = [8, 8], strides = [1, 1]} : vector<8x96xf32> to vector<8x8xf32>
    %63 = arith.truncf %62 : vector<8x8xf32> to vector<8x8xbf16>
    %64 = vector.extract_strided_slice %40 {offsets = [0, 72], sizes = [8, 8], strides = [1, 1]} : vector<8x96xf32> to vector<8x8xf32>
    %65 = arith.truncf %64 : vector<8x8xf32> to vector<8x8xbf16>
    "tpu.trace_start"() <{level = 10 : i32, message = "qe,ke->qk"}> : () -> ()
    %cst_24 = arith.constant dense<0.000000e+00> : vector<8x8xf32>
    %66 = tpu.matmul %61, %63, %cst_24 {dimension_numbers = #tpu.dot_dimension_numbers<[1], [1], [0], [0], [0, 0, 1, 0], [], []>} : vector<8x8xbf16>, vector<8x8xbf16>, vector<8x8xf32> -> vector<8x8xf32>
    "tpu.trace_stop"() : () -> ()
    %cst_25 = arith.constant dense<0xFF800000> : vector<8xf32>
    %67 = vector.multi_reduction <maximumf>, %66, %cst_25 [1] : vector<8x8xf32> to vector<8xf32>
    %68 = vector.shape_cast %67 : vector<8xf32> to vector<8x1xf32>
    %69 = vector.broadcast %68 : vector<8x1xf32> to vector<8x8xf32>
    %70 = arith.subf %66, %69 : vector<8x8xf32>
    %71 = math.exp %70 : vector<8x8xf32>
    %cst_26 = arith.constant dense<0.000000e+00> : vector<8xf32>
    %72 = vector.multi_reduction <add>, %71, %cst_26 [1] : vector<8x8xf32> to vector<8xf32>
    %73 = vector.shape_cast %72 : vector<8xf32> to vector<8x1xf32>
    %74 = tpu.reciprocal %73 {approx = true} : vector<8x1xf32> -> vector<8x1xf32>
    %75 = vector.broadcast %74 : vector<8x1xf32> to vector<8x8xf32>
    %76 = arith.mulf %71, %75 : vector<8x8xf32>
    %77 = arith.truncf %76 : vector<8x8xf32> to vector<8x8xbf16>
    %cst_27 = arith.constant dense<0.000000e+00> : vector<8x8xf32>
    %78 = tpu.matmul %77, %65, %cst_27 {dimension_numbers = #tpu.dot_dimension_numbers<[1], [0], [0], [1], [0, 0, 1, 1], [], []>} : vector<8x8xbf16>, vector<8x8xbf16>, vector<8x8xf32> -> vector<8x8xf32>
    %79 = vector.extract_strided_slice %40 {offsets = [0, 16], sizes = [8, 8], strides = [1, 1]} : vector<8x96xf32> to vector<8x8xf32>
    %80 = arith.truncf %79 : vector<8x8xf32> to vector<8x8xbf16>
    %81 = vector.extract_strided_slice %40 {offsets = [0, 48], sizes = [8, 8], strides = [1, 1]} : vector<8x96xf32> to vector<8x8xf32>
    %82 = arith.truncf %81 : vector<8x8xf32> to vector<8x8xbf16>
    %83 = vector.extract_strided_slice %40 {offsets = [0, 80], sizes = [8, 8], strides = [1, 1]} : vector<8x96xf32> to vector<8x8xf32>
    %84 = arith.truncf %83 : vector<8x8xf32> to vector<8x8xbf16>
    "tpu.trace_start"() <{level = 10 : i32, message = "qe,ke->qk"}> : () -> ()
    %cst_28 = arith.constant dense<0.000000e+00> : vector<8x8xf32>
    %85 = tpu.matmul %80, %82, %cst_28 {dimension_numbers = #tpu.dot_dimension_numbers<[1], [1], [0], [0], [0, 0, 1, 0], [], []>} : vector<8x8xbf16>, vector<8x8xbf16>, vector<8x8xf32> -> vector<8x8xf32>
    "tpu.trace_stop"() : () -> ()
    %cst_29 = arith.constant dense<0xFF800000> : vector<8xf32>
    %86 = vector.multi_reduction <maximumf>, %85, %cst_29 [1] : vector<8x8xf32> to vector<8xf32>
    %87 = vector.shape_cast %86 : vector<8xf32> to vector<8x1xf32>
    %88 = vector.broadcast %87 : vector<8x1xf32> to vector<8x8xf32>
    %89 = arith.subf %85, %88 : vector<8x8xf32>
    %90 = math.exp %89 : vector<8x8xf32>
    %cst_30 = arith.constant dense<0.000000e+00> : vector<8xf32>
    %91 = vector.multi_reduction <add>, %90, %cst_30 [1] : vector<8x8xf32> to vector<8xf32>
    %92 = vector.shape_cast %91 : vector<8xf32> to vector<8x1xf32>
    %93 = tpu.reciprocal %92 {approx = true} : vector<8x1xf32> -> vector<8x1xf32>
    %94 = vector.broadcast %93 : vector<8x1xf32> to vector<8x8xf32>
    %95 = arith.mulf %90, %94 : vector<8x8xf32>
    %96 = arith.truncf %95 : vector<8x8xf32> to vector<8x8xbf16>
    %cst_31 = arith.constant dense<0.000000e+00> : vector<8x8xf32>
    %97 = tpu.matmul %96, %84, %cst_31 {dimension_numbers = #tpu.dot_dimension_numbers<[1], [0], [0], [1], [0, 0, 1, 1], [], []>} : vector<8x8xbf16>, vector<8x8xbf16>, vector<8x8xf32> -> vector<8x8xf32>
    %98 = vector.extract_strided_slice %40 {offsets = [0, 24], sizes = [8, 8], strides = [1, 1]} : vector<8x96xf32> to vector<8x8xf32>
    %99 = arith.truncf %98 : vector<8x8xf32> to vector<8x8xbf16>
    %100 = vector.extract_strided_slice %40 {offsets = [0, 56], sizes = [8, 8], strides = [1, 1]} : vector<8x96xf32> to vector<8x8xf32>
    %101 = arith.truncf %100 : vector<8x8xf32> to vector<8x8xbf16>
    %102 = vector.extract_strided_slice %40 {offsets = [0, 88], sizes = [8, 8], strides = [1, 1]} : vector<8x96xf32> to vector<8x8xf32>
    %103 = arith.truncf %102 : vector<8x8xf32> to vector<8x8xbf16>
    "tpu.trace_start"() <{level = 10 : i32, message = "qe,ke->qk"}> : () -> ()
    %cst_32 = arith.constant dense<0.000000e+00> : vector<8x8xf32>
    %104 = tpu.matmul %99, %101, %cst_32 {dimension_numbers = #tpu.dot_dimension_numbers<[1], [1], [0], [0], [0, 0, 1, 0], [], []>} : vector<8x8xbf16>, vector<8x8xbf16>, vector<8x8xf32> -> vector<8x8xf32>
    "tpu.trace_stop"() : () -> ()
    %cst_33 = arith.constant dense<0xFF800000> : vector<8xf32>
    %105 = vector.multi_reduction <maximumf>, %104, %cst_33 [1] : vector<8x8xf32> to vector<8xf32>
    %106 = vector.shape_cast %105 : vector<8xf32> to vector<8x1xf32>
    %107 = vector.broadcast %106 : vector<8x1xf32> to vector<8x8xf32>
    %108 = arith.subf %104, %107 : vector<8x8xf32>
    %109 = math.exp %108 : vector<8x8xf32>
    %cst_34 = arith.constant dense<0.000000e+00> : vector<8xf32>
    %110 = vector.multi_reduction <add>, %109, %cst_34 [1] : vector<8x8xf32> to vector<8xf32>
    %111 = vector.shape_cast %110 : vector<8xf32> to vector<8x1xf32>
    %112 = tpu.reciprocal %111 {approx = true} : vector<8x1xf32> -> vector<8x1xf32>
    %113 = vector.broadcast %112 : vector<8x1xf32> to vector<8x8xf32>
    %114 = arith.mulf %109, %113 : vector<8x8xf32>
    %115 = arith.truncf %114 : vector<8x8xf32> to vector<8x8xbf16>
    %cst_35 = arith.constant dense<0.000000e+00> : vector<8x8xf32>
    %116 = tpu.matmul %115, %103, %cst_35 {dimension_numbers = #tpu.dot_dimension_numbers<[1], [0], [0], [1], [0, 0, 1, 1], [], []>} : vector<8x8xbf16>, vector<8x8xbf16>, vector<8x8xf32> -> vector<8x8xf32>
    %117 = tpu.concatenate %59, %78, %97, %116 in 1 : vector<8x8xf32>, vector<8x8xf32>, vector<8x8xf32>, vector<8x8xf32> -> vector<8x32xf32>
    %118 = arith.truncf %117 : vector<8x32xf32> to vector<8x32xbf16>
    %c0_36 = arith.constant 0 : index
    %c0_37 = arith.constant 0 : index
    %c0_38 = arith.constant 0 : index
    %119 = vector.load %arg7[%c0_36, %c0_37, %c0_38] : memref<1x32x32xbf16, #tpu.memory_space<vmem>>, vector<1x32x32xbf16>
    %120 = vector.shape_cast %119 : vector<1x32x32xbf16> to vector<32x32xbf16>
    %cst_39 = arith.constant dense<0.000000e+00> : vector<8x32xf32>
    %121 = tpu.matmul %118, %120, %cst_39 {dimension_numbers = #tpu.dot_dimension_numbers<[1], [0], [0], [1], [0, 0, 1, 1], [], []>} : vector<8x32xbf16>, vector<32x32xbf16>, vector<8x32xf32> -> vector<8x32xf32>
    %c0_40 = arith.constant 0 : index
    %c0_41 = arith.constant 0 : index
    %c0_42 = arith.constant 0 : index
    %122 = vector.load %arg8[%c0_40, %c0_41, %c0_42] : memref<1x1x32xf32, #tpu.memory_space<vmem>>, vector<1x1x32xf32>
    %123 = vector.shape_cast %122 : vector<1x1x32xf32> to vector<1x32xf32>
    %124 = vector.broadcast %123 : vector<1x32xf32> to vector<8x32xf32>
    %125 = arith.addf %121, %124 : vector<8x32xf32>
    %126 = arith.addf %4, %125 : vector<8x32xf32>
    %c0_43 = arith.constant 0 : index
    %c0_44 = arith.constant 0 : index
    %c0_45 = arith.constant 0 : index
    %127 = vector.load %arg9[%c0_43, %c0_44, %c0_45] : memref<1x1x32xf32, #tpu.memory_space<vmem>>, vector<1x1x32xf32>
    %128 = vector.shape_cast %127 : vector<1x1x32xf32> to vector<1x32xf32>
    %c0_46 = arith.constant 0 : index
    %c0_47 = arith.constant 0 : index
    %c0_48 = arith.constant 0 : index
    %129 = vector.load %arg10[%c0_46, %c0_47, %c0_48] : memref<1x1x32xf32, #tpu.memory_space<vmem>>, vector<1x1x32xf32>
    %130 = vector.shape_cast %129 : vector<1x1x32xf32> to vector<1x32xf32>
    %cst_49 = arith.constant dense<0.000000e+00> : vector<8xf32>
    %131 = vector.multi_reduction <add>, %126, %cst_49 [1] : vector<8x32xf32> to vector<8xf32>
    %132 = vector.shape_cast %131 : vector<8xf32> to vector<8x1xf32>
    %cst_50 = arith.constant 3.200000e+01 : f32
    %133 = vector.broadcast %cst_50 : f32 to vector<8x1xf32>
    %134 = arith.divf %132, %133 : vector<8x1xf32>
    %135 = vector.broadcast %134 : vector<8x1xf32> to vector<8x32xf32>
    %136 = arith.subf %126, %135 : vector<8x32xf32>
    %137 = vector.broadcast %134 : vector<8x1xf32> to vector<8x32xf32>
    %138 = arith.subf %126, %137 : vector<8x32xf32>
    %139 = arith.mulf %136, %138 : vector<8x32xf32>
    %cst_51 = arith.constant dense<0.000000e+00> : vector<8xf32>
    %140 = vector.multi_reduction <add>, %139, %cst_51 [1] : vector<8x32xf32> to vector<8xf32>
    %141 = vector.shape_cast %140 : vector<8xf32> to vector<8x1xf32>
    %cst_52 = arith.constant 3.200000e+01 : f32
    %142 = vector.broadcast %cst_52 : f32 to vector<8x1xf32>
    %143 = arith.divf %141, %142 : vector<8x1xf32>
    %144 = vector.broadcast %134 : vector<8x1xf32> to vector<8x32xf32>
    %145 = arith.subf %126, %144 : vector<8x32xf32>
    %cst_53 = arith.constant 9.99999997E-7 : f32
    %146 = vector.broadcast %cst_53 : f32 to vector<8x1xf32>
    %147 = arith.addf %143, %146 : vector<8x1xf32>
    %148 = math.rsqrt %147 : vector<8x1xf32>
    %149 = vector.broadcast %148 : vector<8x1xf32> to vector<8x32xf32>
    %150 = arith.mulf %145, %149 : vector<8x32xf32>
    %151 = vector.broadcast %128 : vector<1x32xf32> to vector<8x32xf32>
    %152 = arith.mulf %150, %151 : vector<8x32xf32>
    %153 = vector.broadcast %130 : vector<1x32xf32> to vector<8x32xf32>
    %154 = arith.addf %152, %153 : vector<8x32xf32>
    %155 = arith.truncf %154 : vector<8x32xf32> to vector<8x32xbf16>
    %c0_54 = arith.constant 0 : index
    %c0_55 = arith.constant 0 : index
    %c0_56 = arith.constant 0 : index
    %156 = vector.load %arg11[%c0_54, %c0_55, %c0_56] : memref<1x32x64xbf16, #tpu.memory_space<vmem>>, vector<1x32x64xbf16>
    %157 = vector.shape_cast %156 : vector<1x32x64xbf16> to vector<32x64xbf16>
    %c0_57 = arith.constant 0 : index
    %c0_58 = arith.constant 0 : index
    %c0_59 = arith.constant 0 : index
    %158 = vector.load %arg12[%c0_57, %c0_58, %c0_59] : memref<1x1x64xf32, #tpu.memory_space<vmem>>, vector<1x1x64xf32>
    %159 = vector.shape_cast %158 : vector<1x1x64xf32> to vector<1x64xf32>
    %c0_60 = arith.constant 0 : index
    %c0_61 = arith.constant 0 : index
    %c0_62 = arith.constant 0 : index
    %160 = vector.load %arg13[%c0_60, %c0_61, %c0_62] : memref<1x64x32xbf16, #tpu.memory_space<vmem>>, vector<1x64x32xbf16>
    %161 = vector.shape_cast %160 : vector<1x64x32xbf16> to vector<64x32xbf16>
    %cst_63 = arith.constant 0.000000e+00 : f32
    %162 = vector.broadcast %cst_63 : f32 to vector<8x32xf32>
    %cst_64 = arith.constant dense<0.000000e+00> : vector<8x64xf32>
    %163 = tpu.matmul %155, %157, %cst_64 {dimension_numbers = #tpu.dot_dimension_numbers<[1], [0], [0], [1], [0, 0, 1, 1], [], []>} : vector<8x32xbf16>, vector<32x64xbf16>, vector<8x64xf32> -> vector<8x64xf32>
    %164 = vector.broadcast %159 : vector<1x64xf32> to vector<8x64xf32>
    %165 = arith.addf %163, %164 : vector<8x64xf32>
    %cst_65 = arith.constant 5.000000e-01 : f32
    %166 = vector.broadcast %cst_65 : f32 to vector<8x64xf32>
    %167 = arith.mulf %166, %165 : vector<8x64xf32>
    %cst_66 = arith.constant 4.471500e-02 : f32
    %168 = vector.broadcast %cst_66 : f32 to vector<8x64xf32>
    %169 = arith.mulf %168, %165 : vector<8x64xf32>
    %170 = arith.mulf %169, %165 : vector<8x64xf32>
    %171 = arith.mulf %170, %165 : vector<8x64xf32>
    %172 = arith.addf %165, %171 : vector<8x64xf32>
    %cst_67 = arith.constant 0.797884583 : f32
    %173 = vector.broadcast %cst_67 : f32 to vector<8x64xf32>
    %174 = arith.mulf %173, %172 : vector<8x64xf32>
    %175 = math.tanh %174 : vector<8x64xf32>
    %cst_68 = arith.constant 1.000000e+00 : f32
    %176 = vector.broadcast %cst_68 : f32 to vector<8x64xf32>
    %177 = arith.addf %176, %175 : vector<8x64xf32>
    %178 = arith.mulf %167, %177 : vector<8x64xf32>
    %179 = arith.truncf %178 : vector<8x64xf32> to vector<8x64xbf16>
    %cst_69 = arith.constant dense<0.000000e+00> : vector<8x32xf32>
    %180 = tpu.matmul %179, %161, %cst_69 {dimension_numbers = #tpu.dot_dimension_numbers<[1], [0], [0], [1], [0, 0, 1, 1], [], []>} : vector<8x64xbf16>, vector<64x32xbf16>, vector<8x32xf32> -> vector<8x32xf32>
    %181 = arith.addf %162, %180 : vector<8x32xf32>
    %c0_70 = arith.constant 0 : index
    %c0_71 = arith.constant 0 : index
    %c0_72 = arith.constant 0 : index
    %182 = vector.load %arg14[%c0_70, %c0_71, %c0_72] : memref<1x1x32xf32, #tpu.memory_space<vmem>>, vector<1x1x32xf32>
    %183 = vector.shape_cast %182 : vector<1x1x32xf32> to vector<1x32xf32>
    %184 = vector.broadcast %183 : vector<1x32xf32> to vector<8x32xf32>
    %185 = arith.addf %181, %184 : vector<8x32xf32>
    %186 = arith.addf %126, %185 : vector<8x32xf32>
    %c0_73 = arith.constant 0 : index
    %c0_74 = arith.constant 0 : index
    %c0_75 = arith.constant 0 : index
    %187 = vector.load %arg15[%c0_73, %c0_74, %c0_75] : memref<1x8x32xf32, #tpu.memory_space<vmem>>, vector<1x8x32xf32>
    %188 = vector.shape_cast %187 : vector<1x8x32xf32> to vector<8x32xf32>
    %189 = vector.shape_cast %186 : vector<8x32xf32> to vector<1x8x32xf32>
    tpu.vector_store %arg15[%c0_73, %c0_74, %c0_75], %189 {strides = array<i32>} : memref<1x8x32xf32, #tpu.memory_space<vmem>>, vector<1x8x32xf32>,
    return
  }
  func.func @transform_0(%arg0: i32, %arg1: i32) -> (i32, i32, i32) {
    %c0_i32 = arith.constant 0 : i32
    %c0_i32_0 = arith.constant 0 : i32
    %c0_i32_1 = arith.constant 0 : i32
    return %arg0, %c0_i32, %c0_i32_0 : i32, i32, i32
  }
  func.func @transform_1(%arg0: i32, %arg1: i32) -> (i32, i32, i32) {
    %c0_i32 = arith.constant 0 : i32
    %c0_i32_0 = arith.constant 0 : i32
    %c0_i32_1 = arith.constant 0 : i32
    return %arg1, %c0_i32, %c0_i32_0 : i32, i32, i32
  }
  func.func @transform_2(%arg0: i32, %arg1: i32) -> (i32, i32, i32) {
    %c0_i32 = arith.constant 0 : i32
    %c0_i32_0 = arith.constant 0 : i32
    %c0_i32_1 = arith.constant 0 : i32
    return %arg1, %c0_i32, %c0_i32_0 : i32, i32, i32
  }
  func.func @transform_3(%arg0: i32, %arg1: i32) -> (i32, i32, i32) {
    %c0_i32 = arith.constant 0 : i32
    %c0_i32_0 = arith.constant 0 : i32
    %c0_i32_1 = arith.constant 0 : i32
    return %arg1, %c0_i32, %c0_i32_0 : i32, i32, i32
  }
  func.func @transform_4(%arg0: i32, %arg1: i32) -> (i32, i32, i32) {
    %c0_i32 = arith.constant 0 : i32
    %c0_i32_0 = arith.constant 0 : i32
    %c0_i32_1 = arith.constant 0 : i32
    return %arg1, %c0_i32, %c0_i32_0 : i32, i32, i32
  }
  func.func @transform_5(%arg0: i32, %arg1: i32) -> (i32, i32, i32) {
    %c0_i32 = arith.constant 0 : i32
    %c0_i32_0 = arith.constant 0 : i32
    %c0_i32_1 = arith.constant 0 : i32
    return %arg1, %c0_i32, %c0_i32_0 : i32, i32, i32
  }
  func.func @transform_6(%arg0: i32, %arg1: i32) -> (i32, i32, i32) {
    %c0_i32 = arith.constant 0 : i32
    %c0_i32_0 = arith.constant 0 : i32
    %c0_i32_1 = arith.constant 0 : i32
    return %arg1, %c0_i32, %c0_i32_0 : i32, i32, i32
  }
  func.func @transform_7(%arg0: i32, %arg1: i32) -> (i32, i32, i32) {
    %c0_i32 = arith.constant 0 : i32
    %c0_i32_0 = arith.constant 0 : i32
    %c0_i32_1 = arith.constant 0 : i32
    return %arg1, %c0_i32, %c0_i32_0 : i32, i32, i32
  }
  func.func @transform_8(%arg0: i32, %arg1: i32) -> (i32, i32, i32) {
    %c0_i32 = arith.constant 0 : i32
    %c0_i32_0 = arith.constant 0 : i32
    %c0_i32_1 = arith.constant 0 : i32
    return %arg1, %c0_i32, %c0_i32_0 : i32, i32, i32
  }
  func.func @transform_9(%arg0: i32, %arg1: i32) -> (i32, i32, i32) {
    %c0_i32 = arith.constant 0 : i32
    %c0_i32_0 = arith.constant 0 : i32
    %c0_i32_1 = arith.constant 0 : i32
    return %arg1, %c0_i32, %c0_i32_0 : i32, i32, i32
  }
  func.func @transform_10(%arg0: i32, %arg1: i32) -> (i32, i32, i32) {
    %c0_i32 = arith.constant 0 : i32
    %c0_i32_0 = arith.constant 0 : i32
    %c0_i32_1 = arith.constant 0 : i32
    return %arg1, %c0_i32, %c0_i32_0 : i32, i32, i32
  }
  func.func @transform_11(%arg0: i32, %arg1: i32) -> (i32, i32, i32) {
    %c0_i32 = arith.constant 0 : i32
    %c0_i32_0 = arith.constant 0 : i32
    %c0_i32_1 = arith.constant 0 : i32
    return %arg1, %c0_i32, %c0_i32_0 : i32, i32, i32
  }
  func.func @transform_12(%arg0: i32, %arg1: i32) -> (i32, i32, i32) {
    %c0_i32 = arith.constant 0 : i32
    %c0_i32_0 = arith.constant 0 : i32
    %c0_i32_1 = arith.constant 0 : i32
    return %arg1, %c0_i32, %c0_i32_0 : i32, i32, i32
  }
  func.func @transform_13(%arg0: i32, %arg1: i32) -> (i32, i32, i32) {
    %c0_i32 = arith.constant 0 : i32
    %c0_i32_0 = arith.constant 0 : i32
    %c0_i32_1 = arith.constant 0 : i32
    return %arg0, %c0_i32, %c0_i32_0 : i32, i32, i32
  }
}

</mosaic_0001>

<llo_original>
// kernel: tpu_custom_call.1
$region0: #{tpu_custom_call.1}
  #allocation0 [shape = 'u32[]', space=smem, size = 0x4, offset = 0x4, fixed_abs, tag = 'smem constant byte address 0x4 - core index']
  #allocation1 [shape = 'u32[144,128]{1,0:T(1,128)}', space=vmem, size = 0x12000, scoped, tag = 'internal scratch']
  %s0 = inlined_call_operand.hbm [shape: f32[2,8,32], index: 0, kind: input, shape index: {}]
  %s1 = inlined_call_operand.hbm [shape: f32[2,1,32], index: 1, kind: input, shape index: {}]
  %s2 = inlined_call_operand.vmem [shape: f32[2,1,32], index: 2, kind: input, shape index: {}]
  %s3 = inlined_call_operand.vmem [shape: bf16[2,32,96], index: 3, kind: input, shape index: {}]
  %s4 = inlined_call_operand.vmem [shape: f32[2,1,96], index: 4, kind: input, shape index: {}]
  %s5 = inlined_call_operand.vmem [shape: bf16[2,32,32], index: 5, kind: input, shape index: {}]
  %s6 = inlined_call_operand.vmem [shape: f32[2,1,32], index: 6, kind: input, shape index: {}]
  %s7 = inlined_call_operand.vmem [shape: f32[2,1,32], index: 7, kind: input, shape index: {}]
  %s8 = inlined_call_operand.vmem [shape: f32[2,1,32], index: 8, kind: input, shape index: {}]
  %s9 = inlined_call_operand.vmem [shape: bf16[2,32,64], index: 9, kind: input, shape index: {}]
  %s10 = inlined_call_operand.vmem [shape: f32[2,1,64], index: 10, kind: input, shape index: {}]
  %s11 = inlined_call_operand.vmem [shape: bf16[2,64,32], index: 11, kind: input, shape index: {}]
  %s12 = inlined_call_operand.vmem [shape: f32[2,1,32], index: 12, kind: input, shape index: {}]
  %s13 = inlined_call_operand.hbm [shape: f32[2,8,32], index: 13, kind: output, shape index: {}]
  %s14 = sld [smem:[#allocation0]]
  $region97: #{tpu_custom_call.1} parent=0
    _
  %s16 = ssub.s32 1, %s14
  %s17 = scalar_select 0, %s16, %s14
  $region1: #{tpu_custom_call.1} parent=0
    #allocation2 [shape = 'u8[8192]{0}', space=vmem, size = 0x2000, scoped, tag = 'input window, operand 0']
    #allocation3 [shape = 's32[2]{0}', space=sflag, size = 0x8, scoped, tag = 'scoped memory for tpu_custom_call.1']
    #allocation4 [shape = 's32[2]{0}', space=sflag, size = 0x8, scoped, tag = 'scoped memory for tpu_custom_call.1']
    #allocation5 [shape = 'u8[1024]{0}', space=vmem, size = 0x400, scoped, tag = 'input window, operand 1']
    #allocation6 [shape = 's32[2]{0}', space=sflag, size = 0x8, scoped, tag = 'scoped memory for tpu_custom_call.1']
    #allocation7 [shape = 'u8[8192]{0}', space=vmem, size = 0x2000, scoped, tag = 'output window, operand 0']
    %18 = vsyncpa [#allocation3], 0
    %s19 = scalar_lea.sflag [#allocation3], 1
    %20 = vsyncpa %s19, 0
    %21 = vsyncpa [#allocation6], 0
    %s22 = scalar_lea.sflag [#allocation6], 1
    %23 = vsyncpa %s22, 0
    %24 = vsyncpa [#allocation4], 0
    %s25 = scalar_lea.sflag [#allocation4], 1
    %26 = vsyncpa %s25, 0
    loop: start=0, step=1, limit=6
    $region2: #{tpu_custom_call.1} parent=1 // loop_pre_header
      _
    $region3: #{tpu_custom_call.1} parent=1 // loop_header
      %s28 = sphi 0, %s32
      %p29 = scmp.ge.s32.totalorder %s28, 6
      %s35 = sphi 0, %s47
      %s36 = sphi 0, %s43
      %s37 = sphi 0, %s35
      %s38 = sphi 0, %s36
      %s39 = sphi 0, %s37
      %s40 = sphi 0, %s38
      %s50 = sphi 0, %s52
      %s53 = sphi 0, %s50
      %s54 = sphi 0, %s53
      %s70 = sphi 0, %s54
      %s76 = sphi 0, %s78
      %s79 = sphi 0, %s76
      %s80 = sphi 0, %s79
      %s96 = sphi 0, %s80
      %s102 = sphi 0, %s104
      %s105 = sphi 0, %s102
      %s106 = sphi 0, %s105
      %s122 = sphi 0, %s106
      %s128 = sphi 0, %s130
      %s131 = sphi 0, %s128
      %s132 = sphi 0, %s131
      %s148 = sphi 0, %s132
      %s154 = sphi 0, %s156
      %s157 = sphi 0, %s154
      %s158 = sphi 0, %s157
      %s174 = sphi 0, %s158
      %s180 = sphi 0, %s182
      %s183 = sphi 0, %s180
      %s184 = sphi 0, %s183
      %s200 = sphi 0, %s184
      %s206 = sphi 0, %s208
      %s209 = sphi 0, %s206
      %s210 = sphi 0, %s209
      %s226 = sphi 0, %s210
      %s232 = sphi 0, %s234
      %s235 = sphi 0, %s232
      %s236 = sphi 0, %s235
      %s252 = sphi 0, %s236
      %s258 = sphi 0, %s260
      %s261 = sphi 0, %s258
      %s262 = sphi 0, %s261
      %s278 = sphi 0, %s262
      %s284 = sphi 0, %s286
      %s287 = sphi 0, %s284
      %s288 = sphi 0, %s287
      %s304 = sphi 0, %s288
      %s310 = sphi 0, %s312
      %s313 = sphi 0, %s310
      %s314 = sphi 0, %s313
      %s330 = sphi 0, %s314
      %s336 = sphi 0, %s338
      %s339 = sphi 0, %s336
      %s340 = sphi 0, %s339
      %s356 = sphi 0, %s340
      %s362 = sphi 0, %s364
      %s365 = sphi 0, %s362
      %s366 = sphi 0, %s365
      %s382 = sphi 0, %s366
      %s388 = sphi 0, %s390
      %s391 = sphi 0, %s388
      %s392 = sphi 0, %s391
      %s408 = sphi 0, %s392
    $region4: #{tpu_custom_call.1} parent=1 // loop_header_branch
      %31 = sbr.rel (%p29) target = $region8
    $region5: #{tpu_custom_call.1} parent=1 // loop_body
      %s33 = ssub.s32 %s28, 1
      %s34 = ssub.s32 %s28, 2
      %s41 = sadd.s32 1, %s36
      %p42 = scmp.ge.s32.totalorder %s41, 2
      %s43 = scalar_select %p42, 0, %s41
      %s44 = sadd.s32 1, %s35
      %s45 = scalar_select %p42, %s44, %s35
      %p46 = scmp.ge.s32.totalorder %s45, 2
      %s47 = scalar_select %p46, 0, %s45
      %s48 = ssub.s32 %s35, %s47
      %p49 = scmp.eq.s32.totalorder %s48, 0
      %s51 = sadd.s32 %s50, 1
      %s52 = scalar_select %p49, %s50, %s51
      %p55 = pneg %p49
      %p56 = scmp.eq.s32.totalorder %s28, 3
      %p57 = por %p55, %p56
      %p58 = scmp.ne.s32.totalorder %s50, %s53
      %p59 = scmp.eq.s32.totalorder %s28, 0
      %p60 = por %p58, %p59
      %p61 = scmp.ne.s32.totalorder %s50, %s53
      %p62 = scmp.eq.s32.totalorder %s33, 3
      %p63 = por %p61, %p62
      %p64 = scmp.ne.s32.totalorder %s53, %s54
      %p65 = scmp.eq.s32.totalorder %s33, 0
      %p66 = por %p64, %p65
      %p67 = scmp.ne.s32.totalorder %s53, %s54
      %p68 = scmp.eq.s32.totalorder %s34, 3
      %p69 = por %p67, %p68
      %p71 = scmp.ne.s32.totalorder %s54, %s70
      %p72 = scmp.eq.s32.totalorder %s34, 0
      %p73 = por %p71, %p72
      %s74 = ssub.s32 %s36, %s43
      %p75 = scmp.eq.s32.totalorder %s74, 0
      %s77 = sadd.s32 %s76, 1
      %s78 = scalar_select %p75, %s76, %s77
      %p81 = pneg %p75
      %p82 = scmp.eq.s32.totalorder %s28, 3
      %p83 = por %p81, %p82
      %p84 = scmp.ne.s32.totalorder %s76, %s79
      %p85 = scmp.eq.s32.totalorder %s28, 0
      %p86 = por %p84, %p85
      %p87 = scmp.ne.s32.totalorder %s76, %s79
      %p88 = scmp.eq.s32.totalorder %s33, 3
      %p89 = por %p87, %p88
      %p90 = scmp.ne.s32.totalorder %s79, %s80
      %p91 = scmp.eq.s32.totalorder %s33, 0
      %p92 = por %p90, %p91
      %p93 = scmp.ne.s32.totalorder %s79, %s80
      %p94 = scmp.eq.s32.totalorder %s34, 3
      %p95 = por %p93, %p94
      %p97 = scmp.ne.s32.totalorder %s80, %s96
      %p98 = scmp.eq.s32.totalorder %s34, 0
      %p99 = por %p97, %p98
      %s100 = ssub.s32 %s36, %s43
      %p101 = scmp.eq.s32.totalorder %s100, 0
      %s103 = sadd.s32 %s102, 1
      %s104 = scalar_select %p101, %s102, %s103
      %p107 = pneg %p101
      %p108 = scmp.eq.s32.totalorder %s28, 3
      %p109 = por %p107, %p108
      %p110 = scmp.ne.s32.totalorder %s102, %s105
      %p111 = scmp.eq.s32.totalorder %s28, 0
      %p112 = por %p110, %p111
      %p113 = scmp.ne.s32.totalorder %s102, %s105
      %p114 = scmp.eq.s32.totalorder %s33, 3
      %p115 = por %p113, %p114
      %p116 = scmp.ne.s32.totalorder %s105, %s106
      %p117 = scmp.eq.s32.totalorder %s33, 0
      %p118 = por %p116, %p117
      %p119 = scmp.ne.s32.totalorder %s105, %s106
      %p120 = scmp.eq.s32.totalorder %s34, 3
      %p121 = por %p119, %p120
      %p123 = scmp.ne.s32.totalorder %s106, %s122
      %p124 = scmp.eq.s32.totalorder %s34, 0
      %p125 = por %p123, %p124
      %s126 = ssub.s32 %s36, %s43
      %p127 = scmp.eq.s32.totalorder %s126, 0
      %s129 = sadd.s32 %s128, 1
      %s130 = scalar_select %p127, %s128, %s129
      %p133 = pneg %p127
      %p134 = scmp.eq.s32.totalorder %s28, 3
      %p135 = por %p133, %p134
      %p136 = scmp.ne.s32.totalorder %s128, %s131
      %p137 = scmp.eq.s32.totalorder %s28, 0
      %p138 = por %p136, %p137
      %p139 = scmp.ne.s32.totalorder %s128, %s131
      %p140 = scmp.eq.s32.totalorder %s33, 3
      %p141 = por %p139, %p140
      %p142 = scmp.ne.s32.totalorder %s131, %s132
      %p143 = scmp.eq.s32.totalorder %s33, 0
      %p144 = por %p142, %p143
      %p145 = scmp.ne.s32.totalorder %s131, %s132
      %p146 = scmp.eq.s32.totalorder %s34, 3
      %p147 = por %p145, %p146
      %p149 = scmp.ne.s32.totalorder %s132, %s148
      %p150 = scmp.eq.s32.totalorder %s34, 0
      %p151 = por %p149, %p150
      %s152 = ssub.s32 %s36, %s43
      %p153 = scmp.eq.s32.totalorder %s152, 0
      %s155 = sadd.s32 %s154, 1
      %s156 = scalar_select %p153, %s154, %s155
      %p159 = pneg %p153
      %p160 = scmp.eq.s32.totalorder %s28, 3
      %p161 = por %p159, %p160
      %p162 = scmp.ne.s32.totalorder %s154, %s157
      %p163 = scmp.eq.s32.totalorder %s28, 0
      %p164 = por %p162, %p163
      %p165 = scmp.ne.s32.totalorder %s154, %s157
      %p166 = scmp.eq.s32.totalorder %s33, 3
      %p167 = por %p165, %p166
      %p168 = scmp.ne.s32.totalorder %s157, %s158
      %p169 = scmp.eq.s32.totalorder %s33, 0
      %p170 = por %p168, %p169
      %p171 = scmp.ne.s32.totalorder %s157, %s158
      %p172 = scmp.eq.s32.totalorder %s34, 3
      %p173 = por %p171, %p172
      %p175 = scmp.ne.s32.totalorder %s158, %s174
      %p176 = scmp.eq.s32.totalorder %s34, 0
      %p177 = por %p175, %p176
      %s178 = ssub.s32 %s36, %s43
      %p179 = scmp.eq.s32.totalorder %s178, 0
      %s181 = sadd.s32 %s180, 1
      %s182 = scalar_select %p179, %s180, %s181
      %p185 = pneg %p179
      %p186 = scmp.eq.s32.totalorder %s28, 3
      %p187 = por %p185, %p186
      %p188 = scmp.ne.s32.totalorder %s180, %s183
      %p189 = scmp.eq.s32.totalorder %s28, 0
      %p190 = por %p188, %p189
      %p191 = scmp.ne.s32.totalorder %s180, %s183
      %p192 = scmp.eq.s32.totalorder %s33, 3
      %p193 = por %p191, %p192
      %p194 = scmp.ne.s32.totalorder %s183, %s184
      %p195 = scmp.eq.s32.totalorder %s33, 0
      %p196 = por %p194, %p195
      %p197 = scmp.ne.s32.totalorder %s183, %s184
      %p198 = scmp.eq.s32.totalorder %s34, 3
      %p199 = por %p197, %p198
      %p201 = scmp.ne.s32.totalorder %s184, %s200
      %p202 = scmp.eq.s32.totalorder %s34, 0
      %p203 = por %p201, %p202
      %s204 = ssub.s32 %s36, %s43
      %p205 = scmp.eq.s32.totalorder %s204, 0
      %s207 = sadd.s32 %s206, 1
      %s208 = scalar_select %p205, %s206, %s207
      %p211 = pneg %p205
      %p212 = scmp.eq.s32.totalorder %s28, 3
      %p213 = por %p211, %p212
      %p214 = scmp.ne.s32.totalorder %s206, %s209
      %p215 = scmp.eq.s32.totalorder %s28, 0
      %p216 = por %p214, %p215
      %p217 = scmp.ne.s32.totalorder %s206, %s209
      %p218 = scmp.eq.s32.totalorder %s33, 3
      %p219 = por %p217, %p218
      %p220 = scmp.ne.s32.totalorder %s209, %s210
      %p221 = scmp.eq.s32.totalorder %s33, 0
      %p222 = por %p220, %p221
      %p223 = scmp.ne.s32.totalorder %s209, %s210
      %p224 = scmp.eq.s32.totalorder %s34, 3
      %p225 = por %p223, %p224
      %p227 = scmp.ne.s32.totalorder %s210, %s226
      %p228 = scmp.eq.s32.totalorder %s34, 0
      %p229 = por %p227, %p228
      %s230 = ssub.s32 %s36, %s43
      %p231 = scmp.eq.s32.totalorder %s230, 0
      %s233 = sadd.s32 %s232, 1
      %s234 = scalar_select %p231, %s232, %s233
      %p237 = pneg %p231
      %p238 = scmp.eq.s32.totalorder %s28, 3
      %p239 = por %p237, %p238
      %p240 = scmp.ne.s32.totalorder %s232, %s235
      %p241 = scmp.eq.s32.totalorder %s28, 0
      %p242 = por %p240, %p241
      %p243 = scmp.ne.s32.totalorder %s232, %s235
      %p244 = scmp.eq.s32.totalorder %s33, 3
      %p245 = por %p243, %p244
      %p246 = scmp.ne.s32.totalorder %s235, %s236
      %p247 = scmp.eq.s32.totalorder %s33, 0
      %p248 = por %p246, %p247
      %p249 = scmp.ne.s32.totalorder %s235, %s236
      %p250 = scmp.eq.s32.totalorder %s34, 3
      %p251 = por %p249, %p250
      %p253 = scmp.ne.s32.totalorder %s236, %s252
      %p254 = scmp.eq.s32.totalorder %s34, 0
      %p255 = por %p253, %p254
      %s256 = ssub.s32 %s36, %s43
      %p257 = scmp.eq.s32.totalorder %s256, 0
      %s259 = sadd.s32 %s258, 1
      %s260 = scalar_select %p257, %s258, %s259
      %p263 = pneg %p257
      %p264 = scmp.eq.s32.totalorder %s28, 3
      %p265 = por %p263, %p264
      %p266 = scmp.ne.s32.totalorder %s258, %s261
      %p267 = scmp.eq.s32.totalorder %s28, 0
      %p268 = por %p266, %p267
      %p269 = scmp.ne.s32.totalorder %s258, %s261
      %p270 = scmp.eq.s32.totalorder %s33, 3
      %p271 = por %p269, %p270
      %p272 = scmp.ne.s32.totalorder %s261, %s262
      %p273 = scmp.eq.s32.totalorder %s33, 0
      %p274 = por %p272, %p273
      %p275 = scmp.ne.s32.totalorder %s261, %s262
      %p276 = scmp.eq.s32.totalorder %s34, 3
      %p277 = por %p275, %p276
      %p279 = scmp.ne.s32.totalorder %s262, %s278
      %p280 = scmp.eq.s32.totalorder %s34, 0
      %p281 = por %p279, %p280
      %s282 = ssub.s32 %s36, %s43
      %p283 = scmp.eq.s32.totalorder %s282, 0
      %s285 = sadd.s32 %s284, 1
      %s286 = scalar_select %p283, %s284, %s285
      %p289 = pneg %p283
      %p290 = scmp.eq.s32.totalorder %s28, 3
      %p291 = por %p289, %p290
      %p292 = scmp.ne.s32.totalorder %s284, %s287
      %p293 = scmp.eq.s32.totalorder %s28, 0
      %p294 = por %p292, %p293
      %p295 = scmp.ne.s32.totalorder %s284, %s287
      %p296 = scmp.eq.s32.totalorder %s33, 3
      %p297 = por %p295, %p296
      %p298 = scmp.ne.s32.totalorder %s287, %s288
      %p299 = scmp.eq.s32.totalorder %s33, 0
      %p300 = por %p298, %p299
      %p301 = scmp.ne.s32.totalorder %s287, %s288
      %p302 = scmp.eq.s32.totalorder %s34, 3
      %p303 = por %p301, %p302
      %p305 = scmp.ne.s32.totalorder %s288, %s304
      %p306 = scmp.eq.s32.totalorder %s34, 0
      %p307 = por %p305, %p306
      %s308 = ssub.s32 %s36, %s43
      %p309 = scmp.eq.s32.totalorder %s308, 0
      %s311 = sadd.s32 %s310, 1
      %s312 = scalar_select %p309, %s310, %s311
      %p315 = pneg %p309
      %p316 = scmp.eq.s32.totalorder %s28, 3
      %p317 = por %p315, %p316
      %p318 = scmp.ne.s32.totalorder %s310, %s313
      %p319 = scmp.eq.s32.totalorder %s28, 0
      %p320 = por %p318, %p319
      %p321 = scmp.ne.s32.totalorder %s310, %s313
      %p322 = scmp.eq.s32.totalorder %s33, 3
      %p323 = por %p321, %p322
      %p324 = scmp.ne.s32.totalorder %s313, %s314
      %p325 = scmp.eq.s32.totalorder %s33, 0
      %p326 = por %p324, %p325
      %p327 = scmp.ne.s32.totalorder %s313, %s314
      %p328 = scmp.eq.s32.totalorder %s34, 3
      %p329 = por %p327, %p328
      %p331 = scmp.ne.s32.totalorder %s314, %s330
      %p332 = scmp.eq.s32.totalorder %s34, 0
      %p333 = por %p331, %p332
      %s334 = ssub.s32 %s36, %s43
      %p335 = scmp.eq.s32.totalorder %s334, 0
      %s337 = sadd.s32 %s336, 1
      %s338 = scalar_select %p335, %s336, %s337
      %p341 = pneg %p335
      %p342 = scmp.eq.s32.totalorder %s28, 3
      %p343 = por %p341, %p342
      %p344 = scmp.ne.s32.totalorder %s336, %s339
      %p345 = scmp.eq.s32.totalorder %s28, 0
      %p346 = por %p344, %p345
      %p347 = scmp.ne.s32.totalorder %s336, %s339
      %p348 = scmp.eq.s32.totalorder %s33, 3
      %p349 = por %p347, %p348
      %p350 = scmp.ne.s32.totalorder %s339, %s340
      %p351 = scmp.eq.s32.totalorder %s33, 0
      %p352 = por %p350, %p351
      %p353 = scmp.ne.s32.totalorder %s339, %s340
      %p354 = scmp.eq.s32.totalorder %s34, 3
      %p355 = por %p353, %p354
      %p357 = scmp.ne.s32.totalorder %s340, %s356
      %p358 = scmp.eq.s32.totalorder %s34, 0
      %p359 = por %p357, %p358
      %s360 = ssub.s32 %s36, %s43
      %p361 = scmp.eq.s32.totalorder %s360, 0
      %s363 = sadd.s32 %s362, 1
      %s364 = scalar_select %p361, %s362, %s363
      %p367 = pneg %p361
      %p368 = scmp.eq.s32.totalorder %s28, 3
      %p369 = por %p367, %p368
      %p370 = scmp.ne.s32.totalorder %s362, %s365
      %p371 = scmp.eq.s32.totalorder %s28, 0
      %p372 = por %p370, %p371
      %p373 = scmp.ne.s32.totalorder %s362, %s365
      %p374 = scmp.eq.s32.totalorder %s33, 3
      %p375 = por %p373, %p374
      %p376 = scmp.ne.s32.totalorder %s365, %s366
      %p377 = scmp.eq.s32.totalorder %s33, 0
      %p378 = por %p376, %p377
      %p379 = scmp.ne.s32.totalorder %s365, %s366
      %p380 = scmp.eq.s32.totalorder %s34, 3
      %p381 = por %p379, %p380
      %p383 = scmp.ne.s32.totalorder %s366, %s382
      %p384 = scmp.eq.s32.totalorder %s34, 0
      %p385 = por %p383, %p384
      %s386 = ssub.s32 %s35, %s47
      %p387 = scmp.eq.s32.totalorder %s386, 0
      %s389 = sadd.s32 %s388, 1
      %s390 = scalar_select %p387, %s388, %s389
      %p393 = pneg %p387
      %p394 = scmp.eq.s32.totalorder %s28, 3
      %p395 = por %p393, %p394
      %p396 = scmp.ne.s32.totalorder %s388, %s391
      %p397 = scmp.eq.s32.totalorder %s28, 0
      %p398 = por %p396, %p397
      %p399 = scmp.ne.s32.totalorder %s388, %s391
      %p400 = scmp.eq.s32.totalorder %s33, 3
      %p401 = por %p399, %p400
      %p402 = scmp.ne.s32.totalorder %s391, %s392
      %p403 = scmp.eq.s32.totalorder %s33, 0
      %p404 = por %p402, %p403
      %p405 = scmp.ne.s32.totalorder %s391, %s392
      %p406 = scmp.eq.s32.totalorder %s34, 3
      %p407 = por %p405, %p406
      %p409 = scmp.ne.s32.totalorder %s392, %s408
      %p410 = scmp.eq.s32.totalorder %s34, 0
      %p411 = por %p409, %p410
      %p412 = scmp.le.s32.totalorder 1, %s28
      %p413 = scmp.lt.s32.totalorder %s28, 5
      %p414 = pnand %p412, %p413
      %p415 = pneg %p414
      // Predicated region
      $region9: #{tpu_custom_call.1} parent=5 // pred_check
        _
      $region10: #{tpu_custom_call.1} parent=5 // pred_check_branch
        %417 = sbr.rel (%p414) target = $region12
      $region11: #{tpu_custom_call.1} parent=5 // pred_region
        %s418 = ssub.s32 %s28, 1
      $region12: #{tpu_custom_call.1} parent=5 // pred_fallthru
        _
      %p419 = scmp.lt.s32.totalorder %s28, 4
      // Predicated region
      $region13: #{tpu_custom_call.1} parent=5 // pred_check
        %p420 = pneg %p419
      $region14: #{tpu_custom_call.1} parent=5 // pred_check_branch
        %422 = sbr.rel (%p420) target = $region16
      $region15: #{tpu_custom_call.1} parent=5 // pred_region
        // Predicated region
        $region17: #{tpu_custom_call.1} parent=15 // pred_check
          %p423 = pneg %p60
        $region18: #{tpu_custom_call.1} parent=15 // pred_check_branch
          %425 = sbr.rel (%p423) target = $region20
        $region19: #{tpu_custom_call.1} parent=15 // pred_region
          %s426 = sand.u32 %s50, 1
          %s427 = scalar_lea.sflag [#allocation3], %s426
          %s428 = sand.u32 %s50, 1
          %s429 = smul.addr %s428, 8
          %s430 = scalar_lea.vmem [#allocation2], %s429
          %s432 = ssub.s32 128, 128
          %433 = vsyncadd %s427, %s432
          %s434 = smul.addr %s35, 128
          %s435 = scalar_lea.hbm %s0, %s434
          %s437 = sshll.u32 %s430, 4
          %s438 = int_to_ptr.vmem [resolvable:$true] %s437
          %440 = dma.hbm_to_vmem [thread:$0]  %s435, 128, %s438, %s427
        $region20: #{tpu_custom_call.1} parent=15 // pred_fallthru
          _
        // Predicated region
        $region21: #{tpu_custom_call.1} parent=15 // pred_check
          %p441 = pneg %p86
        $region22: #{tpu_custom_call.1} parent=15 // pred_check_branch
          %443 = sbr.rel (%p441) target = $region24
        $region23: #{tpu_custom_call.1} parent=15 // pred_region
          %s444 = sand.u32 %s76, 1
          %s445 = scalar_lea.sflag [#allocation6], %s444
          %s446 = sand.u32 %s76, 1
          %s447 = scalar_lea.vmem [#allocation5], %s446
          %s449 = ssub.s32 16, 16
          %450 = vsyncadd %s445, %s449
          %s451 = smul.addr %s36, 16
          %s452 = scalar_lea.hbm %s1, %s451
          %s454 = sshll.u32 %s447, 4
          %s455 = int_to_ptr.vmem [resolvable:$true] %s454
          %457 = dma.hbm_to_vmem [thread:$0]  %s452, 16, %s455, %s445
        $region24: #{tpu_custom_call.1} parent=15 // pred_fallthru
          _
        // Predicated region
        $region25: #{tpu_custom_call.1} parent=15 // pred_check
          %p458 = pneg %p112
        $region26: #{tpu_custom_call.1} parent=15 // pred_check_branch
          %460 = sbr.rel (%p458) target = $region28
        $region27: #{tpu_custom_call.1} parent=15 // pred_region
          %p461 = scmp.lt.s32.totalorder %s36, 1
          %s462 = scalar_select %p461, %s36, 1
          %s463 = scalar_lea.vmem %s2, %s462
        $region28: #{tpu_custom_call.1} parent=15 // pred_fallthru
          _
        // Predicated region
        $region29: #{tpu_custom_call.1} parent=15 // pred_check
          %p464 = pneg %p138
        $region30: #{tpu_custom_call.1} parent=15 // pred_check_branch
          %466 = sbr.rel (%p464) target = $region32
        $region31: #{tpu_custom_call.1} parent=15 // pred_region
          %p467 = scmp.lt.s32.totalorder %s36, 1
          %s468 = scalar_select %p467, %s36, 1
          %s469 = smul.addr %s468, 4
          %s470 = smul.addr %s469, 4
          %s471 = scalar_lea.vmem %s3, %s470
        $region32: #{tpu_custom_call.1} parent=15 // pred_fallthru
          _
        // Predicated region
        $region33: #{tpu_custom_call.1} parent=15 // pred_check
          %p472 = pneg %p164
        $region34: #{tpu_custom_call.1} parent=15 // pred_check_branch
          %474 = sbr.rel (%p472) target = $region36
        $region35: #{tpu_custom_call.1} parent=15 // pred_region
          %p475 = scmp.lt.s32.totalorder %s36, 1
          %s476 = scalar_select %p475, %s36, 1
          %s477 = scalar_lea.vmem %s4, %s476
        $region36: #{tpu_custom_call.1} parent=15 // pred_fallthru
          _
        // Predicated region
        $region37: #{tpu_custom_call.1} parent=15 // pred_check
          %p478 = pneg %p190
        $region38: #{tpu_custom_call.1} parent=15 // pred_check_branch
          %480 = sbr.rel (%p478) target = $region40
        $region39: #{tpu_custom_call.1} parent=15 // pred_region
          %p481 = scmp.lt.s32.totalorder %s36, 1
          %s482 = scalar_select %p481, %s36, 1
          %s483 = smul.addr %s482, 4
          %s484 = smul.addr %s483, 4
          %s485 = scalar_lea.vmem %s5, %s484
        $region40: #{tpu_custom_call.1} parent=15 // pred_fallthru
          _
        // Predicated region
        $region41: #{tpu_custom_call.1} parent=15 // pred_check
          %p486 = pneg %p216
        $region42: #{tpu_custom_call.1} parent=15 // pred_check_branch
          %488 = sbr.rel (%p486) target = $region44
        $region43: #{tpu_custom_call.1} parent=15 // pred_region
          %p489 = scmp.lt.s32.totalorder %s36, 1
          %s490 = scalar_select %p489, %s36, 1
          %s491 = scalar_lea.vmem %s6, %s490
        $region44: #{tpu_custom_call.1} parent=15 // pred_fallthru
          _
        // Predicated region
        $region45: #{tpu_custom_call.1} parent=15 // pred_check
          %p492 = pneg %p242
        $region46: #{tpu_custom_call.1} parent=15 // pred_check_branch
          %494 = sbr.rel (%p492) target = $region48
        $region47: #{tpu_custom_call.1} parent=15 // pred_region
          %p495 = scmp.lt.s32.totalorder %s36, 1
          %s496 = scalar_select %p495, %s36, 1
          %s497 = scalar_lea.vmem %s7, %s496
        $region48: #{tpu_custom_call.1} parent=15 // pred_fallthru
          _
        // Predicated region
        $region49: #{tpu_custom_call.1} parent=15 // pred_check
          %p498 = pneg %p268
        $region50: #{tpu_custom_call.1} parent=15 // pred_check_branch
          %500 = sbr.rel (%p498) target = $region52
        $region51: #{tpu_custom_call.1} parent=15 // pred_region
          %p501 = scmp.lt.s32.totalorder %s36, 1
          %s502 = scalar_select %p501, %s36, 1
          %s503 = scalar_lea.vmem %s8, %s502
        $region52: #{tpu_custom_call.1} parent=15 // pred_fallthru
          _
        // Predicated region
        $region53: #{tpu_custom_call.1} parent=15 // pred_check
          %p504 = pneg %p294
        $region54: #{tpu_custom_call.1} parent=15 // pred_check_branch
          %506 = sbr.rel (%p504) target = $region56
        $region55: #{tpu_custom_call.1} parent=15 // pred_region
          %p507 = scmp.lt.s32.totalorder %s36, 1
          %s508 = scalar_select %p507, %s36, 1
          %s509 = smul.addr %s508, 4
          %s510 = smul.addr %s509, 4
          %s511 = scalar_lea.vmem %s9, %s510
        $region56: #{tpu_custom_call.1} parent=15 // pred_fallthru
          _
        // Predicated region
        $region57: #{tpu_custom_call.1} parent=15 // pred_check
          %p512 = pneg %p320
        $region58: #{tpu_custom_call.1} parent=15 // pred_check_branch
          %514 = sbr.rel (%p512) target = $region60
        $region59: #{tpu_custom_call.1} parent=15 // pred_region
          %p515 = scmp.lt.s32.totalorder %s36, 1
          %s516 = scalar_select %p515, %s36, 1
          %s517 = scalar_lea.vmem %s10, %s516
        $region60: #{tpu_custom_call.1} parent=15 // pred_fallthru
          _
        // Predicated region
        $region61: #{tpu_custom_call.1} parent=15 // pred_check
          %p518 = pneg %p346
        $region62: #{tpu_custom_call.1} parent=15 // pred_check_branch
          %520 = sbr.rel (%p518) target = $region64
        $region63: #{tpu_custom_call.1} parent=15 // pred_region
          %p521 = scmp.lt.s32.totalorder %s36, 1
          %s522 = scalar_select %p521, %s36, 1
          %s523 = smul.addr %s522, 8
          %s524 = smul.addr %s523, 4
          %s525 = scalar_lea.vmem %s11, %s524
        $region64: #{tpu_custom_call.1} parent=15 // pred_fallthru
          _
        // Predicated region
        $region65: #{tpu_custom_call.1} parent=15 // pred_check
          %p526 = pneg %p372
        $region66: #{tpu_custom_call.1} parent=15 // pred_check_branch
          %528 = sbr.rel (%p526) target = $region68
        $region67: #{tpu_custom_call.1} parent=15 // pred_region
          %p529 = scmp.lt.s32.totalorder %s36, 1
          %s530 = scalar_select %p529, %s36, 1
          %s531 = scalar_lea.vmem %s12, %s530
        $region68: #{tpu_custom_call.1} parent=15 // pred_fallthru
          _
      $region16: #{tpu_custom_call.1} parent=5 // pred_fallthru
        _
      %p532 = scmp.le.s32.totalorder 1, %s28
      %p533 = scmp.lt.s32.totalorder %s28, 5
      %p534 = pnand %p532, %p533
      %p535 = pneg %p534
      // Predicated region
      $region69: #{tpu_custom_call.1} parent=5 // pred_check
        _
      $region70: #{tpu_custom_call.1} parent=5 // pred_check_branch
        %537 = sbr.rel (%p534) target = $region72
      $region71: #{tpu_custom_call.1} parent=5 // pred_region
        %s538 = ssub.s32 %s28, 1
        %s539 = sand.u32 %s53, 1
        %s540 = scalar_lea.sflag [#allocation3], %s539
        %s541 = sand.u32 %s53, 1
        %s542 = smul.addr %s541, 8
        %s543 = scalar_lea.vmem [#allocation2], %s542
        // Predicated region
        $region73: #{tpu_custom_call.1} parent=71 // pred_check
          %p544 = pneg %p66
        $region74: #{tpu_custom_call.1} parent=71 // pred_check_branch
          %546 = sbr.rel (%p544) target = $region76
        $region75: #{tpu_custom_call.1} parent=71 // pred_region
          %547 = dma.done %s540, 128
        $region76: #{tpu_custom_call.1} parent=71 // pred_fallthru
          _
        %s548 = sand.u32 %s79, 1
        %s549 = scalar_lea.sflag [#allocation6], %s548
        %s550 = sand.u32 %s79, 1
        %s551 = scalar_lea.vmem [#allocation5], %s550
        // Predicated region
        $region77: #{tpu_custom_call.1} parent=71 // pred_check
          %p552 = pneg %p92
        $region78: #{tpu_custom_call.1} parent=71 // pred_check_branch
          %554 = sbr.rel (%p552) target = $region80
        $region79: #{tpu_custom_call.1} parent=71 // pred_region
          %555 = dma.done %s549, 16
        $region80: #{tpu_custom_call.1} parent=71 // pred_fallthru
          _
        %s556 = sand.u32 %s53, 1
        %s557 = scalar_lea.sflag [#allocation3], %s556
        %s558 = sand.u32 %s53, 1
        %s559 = smul.addr %s558, 8
        %s560 = scalar_lea.vmem [#allocation2], %s559
        %p561 = pneg %p66
        %p562 = pneg %p63
        %s563 = sand.u32 %s79, 1
        %s564 = scalar_lea.sflag [#allocation6], %s563
        %s565 = sand.u32 %s79, 1
        %s566 = scalar_lea.vmem [#allocation5], %s565
        %p567 = pneg %p92
        %p568 = pneg %p89
        %p569 = scmp.lt.s32.totalorder %s38, 1
        %s570 = scalar_select %p569, %s38, 1
        %s571 = scalar_lea.vmem %s2, %s570
        %p572 = pneg %p118
        %p573 = pneg %p115
        %p574 = scmp.lt.s32.totalorder %s38, 1
        %s575 = scalar_select %p574, %s38, 1
        %s576 = smul.addr %s575, 4
        %s577 = smul.addr %s576, 4
        %s578 = scalar_lea.vmem %s3, %s577
        %p579 = pneg %p144
        %p580 = pneg %p141
        %p581 = scmp.lt.s32.totalorder %s38, 1
        %s582 = scalar_select %p581, %s38, 1
        %s583 = scalar_lea.vmem %s4, %s582
        %p584 = pneg %p170
        %p585 = pneg %p167
        %p586 = scmp.lt.s32.totalorder %s38, 1
        %s587 = scalar_select %p586, %s38, 1
        %s588 = smul.addr %s587, 4
        %s589 = smul.addr %s588, 4
        %s590 = scalar_lea.vmem %s5, %s589
        %p591 = pneg %p196
        %p592 = pneg %p193
        %p593 = scmp.lt.s32.totalorder %s38, 1
        %s594 = scalar_select %p593, %s38, 1
        %s595 = scalar_lea.vmem %s6, %s594
        %p596 = pneg %p222
        %p597 = pneg %p219
        %p598 = scmp.lt.s32.totalorder %s38, 1
        %s599 = scalar_select %p598, %s38, 1
        %s600 = scalar_lea.vmem %s7, %s599
        %p601 = pneg %p248
        %p602 = pneg %p245
        %p603 = scmp.lt.s32.totalorder %s38, 1
        %s604 = scalar_select %p603, %s38, 1
        %s605 = scalar_lea.vmem %s8, %s604
        %p606 = pneg %p274
        %p607 = pneg %p271
        %p608 = scmp.lt.s32.totalorder %s38, 1
        %s609 = scalar_select %p608, %s38, 1
        %s610 = smul.addr %s609, 4
        %s611 = smul.addr %s610, 4
        %s612 = scalar_lea.vmem %s9, %s611
        %p613 = pneg %p300
        %p614 = pneg %p297
        %p615 = scmp.lt.s32.totalorder %s38, 1
        %s616 = scalar_select %p615, %s38, 1
        %s617 = scalar_lea.vmem %s10, %s616
        %p618 = pneg %p326
        %p619 = pneg %p323
        %p620 = scmp.lt.s32.totalorder %s38, 1
        %s621 = scalar_select %p620, %s38, 1
        %s622 = smul.addr %s621, 8
        %s623 = smul.addr %s622, 4
        %s624 = scalar_lea.vmem %s11, %s623
        %p625 = pneg %p352
        %p626 = pneg %p349
        %p627 = scmp.lt.s32.totalorder %s38, 1
        %s628 = scalar_select %p627, %s38, 1
        %s629 = scalar_lea.vmem %s12, %s628
        %p630 = pneg %p378
        %p631 = pneg %p375
        %p632 = pneg %p404
        %p633 = pneg %p401
        %s634 = sand.u32 %s391, 1
        %s635 = scalar_lea.sflag [#allocation4], %s634
        %s636 = sand.u32 %s391, 1
        %s637 = smul.addr %s636, 8
        %s638 = scalar_lea.vmem [#allocation7], %s637
        %p639 = scmp.lt.s32.totalorder %s38, 1
        %s640 = scalar_select %p639, %s38, 1
        %s641 = scalar_lea.vmem %s2, %s640
        %p642 = scmp.lt.s32.totalorder %s38, 1
        %s643 = scalar_select %p642, %s38, 1
        %s644 = smul.addr %s643, 4
        %s645 = smul.addr %s644, 4
        %s646 = scalar_lea.vmem %s3, %s645
        %p647 = scmp.lt.s32.totalorder %s38, 1
        %s648 = scalar_select %p647, %s38, 1
        %s649 = scalar_lea.vmem %s4, %s648
        %p650 = scmp.lt.s32.totalorder %s38, 1
        %s651 = scalar_select %p650, %s38, 1
        %s652 = smul.addr %s651, 4
        %s653 = smul.addr %s652, 4
        %s654 = scalar_lea.vmem %s5, %s653
        %p655 = scmp.lt.s32.totalorder %s38, 1
        %s656 = scalar_select %p655, %s38, 1
        %s657 = scalar_lea.vmem %s6, %s656
        %p658 = scmp.lt.s32.totalorder %s38, 1
        %s659 = scalar_select %p658, %s38, 1
        %s660 = scalar_lea.vmem %s7, %s659
        %p661 = scmp.lt.s32.totalorder %s38, 1
        %s662 = scalar_select %p661, %s38, 1
        %s663 = scalar_lea.vmem %s8, %s662
        %p664 = scmp.lt.s32.totalorder %s38, 1
        %s665 = scalar_select %p664, %s38, 1
        %s666 = smul.addr %s665, 4
        %s667 = smul.addr %s666, 4
        %s668 = scalar_lea.vmem %s9, %s667
        %p669 = scmp.lt.s32.totalorder %s38, 1
        %s670 = scalar_select %p669, %s38, 1
        %s671 = scalar_lea.vmem %s10, %s670
        %p672 = scmp.lt.s32.totalorder %s38, 1
        %s673 = scalar_select %p672, %s38, 1
        %s674 = smul.addr %s673, 8
        %s675 = smul.addr %s674, 4
        %s676 = scalar_lea.vmem %s11, %s675
        %p677 = scmp.lt.s32.totalorder %s38, 1
        %s678 = scalar_select %p677, %s38, 1
        %s679 = scalar_lea.vmem %s12, %s678
        %p681 = scmp.eq.s32.totalorder %s38, 0
        // Predicated region
        $region81: #{tpu_custom_call.1} parent=71 // pred_check
          %p682 = pneg %p681
        $region82: #{tpu_custom_call.1} parent=71 // pred_check_branch
          %684 = sbr.rel (%p682) target = $region84
        $region83: #{tpu_custom_call.1} parent=71 // pred_region
          %v685 = vld [vmem:[%s543] sm:$0xff]
          %vm686 = vcmask 261120
          %687 = vst.msk [vmem:[%s638] sm:$0xff] %vm686, %v685
        $region84: #{tpu_custom_call.1} parent=71 // pred_fallthru
          _
        %v688 = vld [vmem:[%s638] sm:$0xff]
        %v689 = vld [vmem:[%s551] sm:$0x1]
        %v690 = vld [vmem:[%s641] sm:$0x1]
        %vm691 = vcmask 261120
        %v692 = vsel %vm691, %v688, 0.0
        %693 = vadd.xlane.f32.xlu0 %v692
        %v694 = vpop.xlane.xlu0 %693
        %v695 = vrcp.pop 32.0
        %v696 = vmul.f32 %v694, %v695
        %v697 = vsub.f32 %v688, %v696
        %v698 = vmul.f32 %v697, %v697
        %v699 = vsel %vm691, %v698, 0.0
        %700 = vadd.xlane.f32.xlu0 %v699
        %v701 = vpop.xlane.xlu0 %700
        %v702 = vmul.f32 %v701, %v695
        %v703 = vadd.f32 %v702, 1e-06
        %v704 = vrsqrt.pop %v703
        %v705 = vmul.f32 %v697, %v704
        %v707 = vlaneseq
        %v708 = vshrl.u32 %v707, 7
        %v709 = vsub.s32 0, %v708
        %v710 = vrot.slane %v689, %v709
        %v712 = vmul.f32 %v705, %v710
        %v714 = vlaneseq
        %v715 = vshrl.u32 %v714, 7
        %v716 = vsub.s32 0, %v715
        %v717 = vrot.slane %v690, %v716
        %v719 = vadd.f32 %v712, %v717
        %v720 = vpack.c.bf16 %v719, %v719
        %v721 = vld [vmem:[%s646] sm:$0xf]
        %v722 = vld [vmem:[%s646 + $0x4] sm:$0xf]
        %v723 = vld [vmem:[%s646 + $0x8] sm:$0xf]
        %v724 = vld [vmem:[%s646 + $0xc] sm:$0xf]
        %v725 = vld [vmem:[%s649] sm:$0x1]
        %v727 = vlaneseq
        %v728 = vshrl.u32 %v727, 7
        %v729 = vsub.s32 0, %v728
        %v730 = vrot.slane %v725, %v729
        %v736 = vunpack.c.l.b16 %v721
        %v737 = vunpack.c.l.b16 %v722
        %v738 = vunpack.c.l.b16 %v723
        %v739 = vunpack.c.l.b16 %v724
        %v740 = vpack.c.b16 %v737, %v736
        %v741 = vpack.c.b16 %v739, %v738
        %v745 = vsel %vm691, %v720, 0
        %747 = vmatprep.subr.bf16.mxu0 0
        %748 = vmatpush1.bf16.msra.mxu0 0
        %749 = vmatprep.subr.bf16.mxu0 0
        %750 = vmatpush1.bf16.msra.mxu0 0
        %751 = vmatprep.subr.bf16.mxu0 0
        %752 = vmatpush1.bf16.msra.mxu0 0
        %753 = vmatprep.subr.bf16.mxu0 0
        %754 = vmatpush1.bf16.msra.mxu0 0
        %755 = vmatprep.subr.bf16.mxu0 0
        %756 = vmatpush1.bf16.msra.mxu0 0
        %757 = vmatprep.subr.bf16.mxu0 0
        %758 = vmatpush1.bf16.msra.mxu0 0
        %759 = vmatprep.subr.bf16.mxu0 0
        %760 = vmatpush1.bf16.msra.mxu0 %v741
        %761 = vmatprep.subr.bf16.mxu0 0
        %762 = vmatpush1.bf16.msra.mxu0 %v740
        %763 = vmatprep.subr.bf16.mxu0 0
        %764 = vmatpush2.bf16.msra.mxu0 0
        %765 = vmatprep.subr.bf16.mxu0 0
        %766 = vmatpush2.bf16.msra.mxu0 0
        %767 = vmatprep.subr.bf16.mxu0 0
        %768 = vmatpush2.bf16.msra.mxu0 0
        %769 = vmatprep.subr.bf16.mxu0 0
        %770 = vmatpush2.bf16.msra.mxu0 0
        %771 = vmatprep.subr.bf16.mxu0 0
        %772 = vmatpush2.bf16.msra.mxu0 0
        %773 = vmatprep.subr.bf16.mxu0 0
        %774 = vmatpush2.bf16.msra.mxu0 0
        %775 = vmatprep.subr.bf16.mxu0 0
        %776 = vmatpush2.bf16.msra.mxu0 0
        %777 = vmatprep.subr.bf16.mxu0 0
        %778 = vmatpush2.bf16.msra.mxu0 0
        %779 = vmatprep.mubr.bf16.mxu0 0
        %780 = vmatmul.mubr.bf16.gmra.mxu0 %v745
        %v781 = vpop.f32.mrf.mxu0
        %v782 = vadd.f32 %v730, %v781
        %v783 = vpop.f32.mrf.mxu0
        %v784 = vpop.f32.mrf.mxu0
        %v785 = vpop.f32.mrf.mxu0
        %786 = vdwg.mxu0
        %v787 = vpack.c.bf16 %v782, %v782
        %789 = vrot.lane.b32.xlu0 %v787, 96
        %v790 = vpop.permute.xlu0 %789
        %vm791 = vcmask 64512
        %v793 = vsel %vm791, %v787, 0
        %v796 = vsel %vm791, %v790, 0
        %798 = vmatprep.subr.bf16.mxu0 0
        %799 = vmatpush1.bf16.xpose.msra.mxu0 0
        %800 = vmatprep.subr.bf16.mxu0 0
        %801 = vmatpush1.bf16.xpose.msra.mxu0 0
        %802 = vmatprep.subr.bf16.mxu0 0
        %803 = vmatpush1.bf16.xpose.msra.mxu0 0
        %804 = vmatprep.subr.bf16.mxu0 0
        %805 = vmatpush1.bf16.xpose.msra.mxu0 0
        %806 = vmatprep.subr.bf16.mxu0 0
        %807 = vmatpush1.bf16.xpose.msra.mxu0 0
        %808 = vmatprep.subr.bf16.mxu0 0
        %809 = vmatpush1.bf16.xpose.msra.mxu0 0
        %810 = vmatprep.subr.bf16.mxu0 0
        %811 = vmatpush1.bf16.xpose.msra.mxu0 0
        %812 = vmatprep.subr.bf16.mxu0 0
        %813 = vmatpush1.bf16.xpose.msra.mxu0 %v796
        %814 = vmatprep.subr.bf16.mxu0 0
        %815 = vmatpush2.bf16.xpose.msra.mxu0 0
        %816 = vmatprep.subr.bf16.mxu0 0
        %817 = vmatpush2.bf16.xpose.msra.mxu0 0
        %818 = vmatprep.subr.bf16.mxu0 0
        %819 = vmatpush2.bf16.xpose.msra.mxu0 0
        %820 = vmatprep.subr.bf16.mxu0 0
        %821 = vmatpush2.bf16.xpose.msra.mxu0 0
        %822 = vmatprep.subr.bf16.mxu0 0
        %823 = vmatpush2.bf16.xpose.msra.mxu0 0
        %824 = vmatprep.subr.bf16.mxu0 0
        %825 = vmatpush2.bf16.xpose.msra.mxu0 0
        %826 = vmatprep.subr.bf16.mxu0 0
        %827 = vmatpush2.bf16.xpose.msra.mxu0 0
        %828 = vmatprep.subr.bf16.mxu0 0
        %829 = vmatpush2.bf16.xpose.msra.mxu0 0
        %830 = vmatprep.mubr.bf16.mxu0 0
        %831 = vmatmul.mubr.bf16.gmra.mxu0 %v793
        %v832 = vpop.f32.mrf.mxu0
        %v833 = vadd.f32 0.0, %v832
        %v834 = vpop.f32.mrf.mxu0
        %v835 = vpop.f32.mrf.mxu0
        %v836 = vpop.f32.mrf.mxu0
        %837 = vdwg.mxu0
        %v838 = vsel %vm791, %v833, -inf
        %839 = vmax.xlane.f32.xlu0 %v838
        %v840 = vpop.xlane.xlu0 %839
        %v841 = vsub.f32 %v833, %v840
        %v842 = vmul.f32 %v841, 1.442695
        %v843 = vpow.pop %v842
        %v844 = vsel %vm791, %v843, 0.0
        %845 = vadd.xlane.f32.xlu0 %v844
        %v846 = vpop.xlane.xlu0 %845
        %v847 = vrcp.pop %v846
        %v848 = vmul.f32 %v843, %v847
        %v849 = vpack.c.bf16 %v848, %v848
        %850 = vrot.lane.b32.xlu0 %v787, 64
        %v851 = vpop.permute.xlu0 %850
        %v853 = vsel %vm791, %v849, 0
        %vm855 = vcmask 1043456
        %v857 = vsel %vm855, %v851, 0
        %859 = vmatprep.subr.bf16.mxu0 0
        %860 = vmatpush1.bf16.msra.mxu0 0
        %861 = vmatprep.subr.bf16.mxu0 0
        %862 = vmatpush1.bf16.msra.mxu0 0
        %863 = vmatprep.subr.bf16.mxu0 0
        %864 = vmatpush1.bf16.msra.mxu0 0
        %865 = vmatprep.subr.bf16.mxu0 0
        %866 = vmatpush1.bf16.msra.mxu0 0
        %867 = vmatprep.subr.bf16.mxu0 0
        %868 = vmatpush1.bf16.msra.mxu0 0
        %869 = vmatprep.subr.bf16.mxu0 0
        %870 = vmatpush1.bf16.msra.mxu0 0
        %871 = vmatprep.subr.bf16.mxu0 0
        %872 = vmatpush1.bf16.msra.mxu0 0
        %873 = vmatprep.subr.bf16.mxu0 0
        %874 = vmatpush1.bf16.msra.mxu0 %v857
        %875 = vmatprep.subr.bf16.mxu0 0
        %876 = vmatpush2.bf16.msra.mxu0 0
        %877 = vmatprep.subr.bf16.mxu0 0
        %878 = vmatpush2.bf16.msra.mxu0 0
        %879 = vmatprep.subr.bf16.mxu0 0
        %880 = vmatpush2.bf16.msra.mxu0 0
        %881 = vmatprep.subr.bf16.mxu0 0
        %882 = vmatpush2.bf16.msra.mxu0 0
        %883 = vmatprep.subr.bf16.mxu0 0
        %884 = vmatpush2.bf16.msra.mxu0 0
        %885 = vmatprep.subr.bf16.mxu0 0
        %886 = vmatpush2.bf16.msra.mxu0 0
        %887 = vmatprep.subr.bf16.mxu0 0
        %888 = vmatpush2.bf16.msra.mxu0 0
        %889 = vmatprep.subr.bf16.mxu0 0
        %890 = vmatpush2.bf16.msra.mxu0 0
        %891 = vmatprep.mubr.bf16.mxu0 0
        %892 = vmatmul.mubr.bf16.gmra.mxu0 %v853
        %v893 = vpop.f32.mrf.mxu0
        %v894 = vadd.f32 0.0, %v893
        %v895 = vpop.f32.mrf.mxu0
        %v896 = vpop.f32.mrf.mxu0
        %v897 = vpop.f32.mrf.mxu0
        %898 = vdwg.mxu0
        %899 = vrot.lane.b32.xlu0 %v787, 120
        %v900 = vpop.permute.xlu0 %899
        %901 = vrot.lane.b32.xlu0 %v787, 88
        %v902 = vpop.permute.xlu0 %901
        %v904 = vsel %vm791, %v900, 0
        %v907 = vsel %vm791, %v902, 0
        %909 = vmatprep.subr.bf16.mxu0 0
        %910 = vmatpush1.bf16.xpose.msra.mxu0 0
        %911 = vmatprep.subr.bf16.mxu0 0
        %912 = vmatpush1.bf16.xpose.msra.mxu0 0
        %913 = vmatprep.subr.bf16.mxu0 0
        %914 = vmatpush1.bf16.xpose.msra.mxu0 0
        %915 = vmatprep.subr.bf16.mxu0 0
        %916 = vmatpush1.bf16.xpose.msra.mxu0 0
        %917 = vmatprep.subr.bf16.mxu0 0
        %918 = vmatpush1.bf16.xpose.msra.mxu0 0
        %919 = vmatprep.subr.bf16.mxu0 0
        %920 = vmatpush1.bf16.xpose.msra.mxu0 0
        %921 = vmatprep.subr.bf16.mxu0 0
        %922 = vmatpush1.bf16.xpose.msra.mxu0 0
        %923 = vmatprep.subr.bf16.mxu0 0
        %924 = vmatpush1.bf16.xpose.msra.mxu0 %v907
        %925 = vmatprep.subr.bf16.mxu0 0
        %926 = vmatpush2.bf16.xpose.msra.mxu0 0
        %927 = vmatprep.subr.bf16.mxu0 0
        %928 = vmatpush2.bf16.xpose.msra.mxu0 0
        %929 = vmatprep.subr.bf16.mxu0 0
        %930 = vmatpush2.bf16.xpose.msra.mxu0 0
        %931 = vmatprep.subr.bf16.mxu0 0
        %932 = vmatpush2.bf16.xpose.msra.mxu0 0
        %933 = vmatprep.subr.bf16.mxu0 0
        %934 = vmatpush2.bf16.xpose.msra.mxu0 0
        %935 = vmatprep.subr.bf16.mxu0 0
        %936 = vmatpush2.bf16.xpose.msra.mxu0 0
        %937 = vmatprep.subr.bf16.mxu0 0
        %938 = vmatpush2.bf16.xpose.msra.mxu0 0
        %939 = vmatprep.subr.bf16.mxu0 0
        %940 = vmatpush2.bf16.xpose.msra.mxu0 0
        %941 = vmatprep.mubr.bf16.mxu0 0
        %942 = vmatmul.mubr.bf16.gmra.mxu0 %v904
        %v943 = vpop.f32.mrf.mxu0
        %v944 = vadd.f32 0.0, %v943
        %v945 = vpop.f32.mrf.mxu0
        %v946 = vpop.f32.mrf.mxu0
        %v947 = vpop.f32.mrf.mxu0
        %948 = vdwg.mxu0
        %v949 = vsel %vm791, %v944, -inf
        %950 = vmax.xlane.f32.xlu0 %v949
        %v951 = vpop.xlane.xlu0 %950
        %v952 = vsub.f32 %v944, %v951
        %v953 = vmul.f32 %v952, 1.442695
        %v954 = vpow.pop %v953
        %v955 = vsel %vm791, %v954, 0.0
        %956 = vadd.xlane.f32.xlu0 %v955
        %v957 = vpop.xlane.xlu0 %956
        %v958 = vrcp.pop %v957
        %v959 = vmul.f32 %v954, %v958
        %v960 = vpack.c.bf16 %v959, %v959
        %961 = vrot.lane.b32.xlu0 %v787, 56
        %v962 = vpop.permute.xlu0 %961
        %v964 = vsel %vm791, %v960, 0
        %v967 = vsel %vm855, %v962, 0
        %969 = vmatprep.subr.bf16.mxu0 0
        %970 = vmatpush1.bf16.msra.mxu0 0
        %971 = vmatprep.subr.bf16.mxu0 0
        %972 = vmatpush1.bf16.msra.mxu0 0
        %973 = vmatprep.subr.bf16.mxu0 0
        %974 = vmatpush1.bf16.msra.mxu0 0
        %975 = vmatprep.subr.bf16.mxu0 0
        %976 = vmatpush1.bf16.msra.mxu0 0
        %977 = vmatprep.subr.bf16.mxu0 0
        %978 = vmatpush1.bf16.msra.mxu0 0
        %979 = vmatprep.subr.bf16.mxu0 0
        %980 = vmatpush1.bf16.msra.mxu0 0
        %981 = vmatprep.subr.bf16.mxu0 0
        %982 = vmatpush1.bf16.msra.mxu0 0
        %983 = vmatprep.subr.bf16.mxu0 0
        %984 = vmatpush1.bf16.msra.mxu0 %v967
        %985 = vmatprep.subr.bf16.mxu0 0
        %986 = vmatpush2.bf16.msra.mxu0 0
        %987 = vmatprep.subr.bf16.mxu0 0
        %988 = vmatpush2.bf16.msra.mxu0 0
        %989 = vmatprep.subr.bf16.mxu0 0
        %990 = vmatpush2.bf16.msra.mxu0 0
        %991 = vmatprep.subr.bf16.mxu0 0
        %992 = vmatpush2.bf16.msra.mxu0 0
        %993 = vmatprep.subr.bf16.mxu0 0
        %994 = vmatpush2.bf16.msra.mxu0 0
        %995 = vmatprep.subr.bf16.mxu0 0
        %996 = vmatpush2.bf16.msra.mxu0 0
        %997 = vmatprep.subr.bf16.mxu0 0
        %998 = vmatpush2.bf16.msra.mxu0 0
        %999 = vmatprep.subr.bf16.mxu0 0
        %1000 = vmatpush2.bf16.msra.mxu0 0
        %1001 = vmatprep.mubr.bf16.mxu0 0
        %1002 = vmatmul.mubr.bf16.gmra.mxu0 %v964
        %v1003 = vpop.f32.mrf.mxu0
        %v1004 = vadd.f32 0.0, %v1003
        %v1005 = vpop.f32.mrf.mxu0
        %v1006 = vpop.f32.mrf.mxu0
        %v1007 = vpop.f32.mrf.mxu0
        %1008 = vdwg.mxu0
        %1009 = vrot.lane.b32.xlu0 %v787, 112
        %v1010 = vpop.permute.xlu0 %1009
        %1011 = vrot.lane.b32.xlu0 %v787, 80
        %v1012 = vpop.permute.xlu0 %1011
        %v1014 = vsel %vm791, %v1010, 0
        %v1017 = vsel %vm791, %v1012, 0
        %1019 = vmatprep.subr.bf16.mxu0 0
        %1020 = vmatpush1.bf16.xpose.msra.mxu0 0
        %1021 = vmatprep.subr.bf16.mxu0 0
        %1022 = vmatpush1.bf16.xpose.msra.mxu0 0
        %1023 = vmatprep.subr.bf16.mxu0 0
        %1024 = vmatpush1.bf16.xpose.msra.mxu0 0
        %1025 = vmatprep.subr.bf16.mxu0 0
        %1026 = vmatpush1.bf16.xpose.msra.mxu0 0
        %1027 = vmatprep.subr.bf16.mxu0 0
        %1028 = vmatpush1.bf16.xpose.msra.mxu0 0
        %1029 = vmatprep.subr.bf16.mxu0 0
        %1030 = vmatpush1.bf16.xpose.msra.mxu0 0
        %1031 = vmatprep.subr.bf16.mxu0 0
        %1032 = vmatpush1.bf16.xpose.msra.mxu0 0
        %1033 = vmatprep.subr.bf16.mxu0 0
        %1034 = vmatpush1.bf16.xpose.msra.mxu0 %v1017
        %1035 = vmatprep.subr.bf16.mxu0 0
        %1036 = vmatpush2.bf16.xpose.msra.mxu0 0
        %1037 = vmatprep.subr.bf16.mxu0 0
        %1038 = vmatpush2.bf16.xpose.msra.mxu0 0
        %1039 = vmatprep.subr.bf16.mxu0 0
        %1040 = vmatpush2.bf16.xpose.msra.mxu0 0
        %1041 = vmatprep.subr.bf16.mxu0 0
        %1042 = vmatpush2.bf16.xpose.msra.mxu0 0
        %1043 = vmatprep.subr.bf16.mxu0 0
        %1044 = vmatpush2.bf16.xpose.msra.mxu0 0
        %1045 = vmatprep.subr.bf16.mxu0 0
        %1046 = vmatpush2.bf16.xpose.msra.mxu0 0
        %1047 = vmatprep.subr.bf16.mxu0 0
        %1048 = vmatpush2.bf16.xpose.msra.mxu0 0
        %1049 = vmatprep.subr.bf16.mxu0 0
        %1050 = vmatpush2.bf16.xpose.msra.mxu0 0
        %1051 = vmatprep.mubr.bf16.mxu0 0
        %1052 = vmatmul.mubr.bf16.gmra.mxu0 %v1014
        %v1053 = vpop.f32.mrf.mxu0
        %v1054 = vadd.f32 0.0, %v1053
        %v1055 = vpop.f32.mrf.mxu0
        %v1056 = vpop.f32.mrf.mxu0
        %v1057 = vpop.f32.mrf.mxu0
        %1058 = vdwg.mxu0
        %v1059 = vsel %vm791, %v1054, -inf
        %1060 = vmax.xlane.f32.xlu0 %v1059
        %v1061 = vpop.xlane.xlu0 %1060
        %v1062 = vsub.f32 %v1054, %v1061
        %v1063 = vmul.f32 %v1062, 1.442695
        %v1064 = vpow.pop %v1063
        %v1065 = vsel %vm791, %v1064, 0.0
        %1066 = vadd.xlane.f32.xlu0 %v1065
        %v1067 = vpop.xlane.xlu0 %1066
        %v1068 = vrcp.pop %v1067
        %v1069 = vmul.f32 %v1064, %v1068
        %v1070 = vpack.c.bf16 %v1069, %v1069
        %1071 = vrot.lane.b32.xlu0 %v787, 48
        %v1072 = vpop.permute.xlu0 %1071
        %v1074 = vsel %vm791, %v1070, 0
        %v1077 = vsel %vm855, %v1072, 0
        %1079 = vmatprep.subr.bf16.mxu0 0
        %1080 = vmatpush1.bf16.msra.mxu0 0
        %1081 = vmatprep.subr.bf16.mxu0 0
        %1082 = vmatpush1.bf16.msra.mxu0 0
        %1083 = vmatprep.subr.bf16.mxu0 0
        %1084 = vmatpush1.bf16.msra.mxu0 0
        %1085 = vmatprep.subr.bf16.mxu0 0
        %1086 = vmatpush1.bf16.msra.mxu0 0
        %1087 = vmatprep.subr.bf16.mxu0 0
        %1088 = vmatpush1.bf16.msra.mxu0 0
        %1089 = vmatprep.subr.bf16.mxu0 0
        %1090 = vmatpush1.bf16.msra.mxu0 0
        %1091 = vmatprep.subr.bf16.mxu0 0
        %1092 = vmatpush1.bf16.msra.mxu0 0
        %1093 = vmatprep.subr.bf16.mxu0 0
        %1094 = vmatpush1.bf16.msra.mxu0 %v1077
        %1095 = vmatprep.subr.bf16.mxu0 0
        %1096 = vmatpush2.bf16.msra.mxu0 0
        %1097 = vmatprep.subr.bf16.mxu0 0
        %1098 = vmatpush2.bf16.msra.mxu0 0
        %1099 = vmatprep.subr.bf16.mxu0 0
        %1100 = vmatpush2.bf16.msra.mxu0 0
        %1101 = vmatprep.subr.bf16.mxu0 0
        %1102 = vmatpush2.bf16.msra.mxu0 0
        %1103 = vmatprep.subr.bf16.mxu0 0
        %1104 = vmatpush2.bf16.msra.mxu0 0
        %1105 = vmatprep.subr.bf16.mxu0 0
        %1106 = vmatpush2.bf16.msra.mxu0 0
        %1107 = vmatprep.subr.bf16.mxu0 0
        %1108 = vmatpush2.bf16.msra.mxu0 0
        %1109 = vmatprep.subr.bf16.mxu0 0
        %1110 = vmatpush2.bf16.msra.mxu0 0
        %1111 = vmatprep.mubr.bf16.mxu0 0
        %1112 = vmatmul.mubr.bf16.gmra.mxu0 %v1074
        %v1113 = vpop.f32.mrf.mxu0
        %v1114 = vadd.f32 0.0, %v1113
        %v1115 = vpop.f32.mrf.mxu0
        %v1116 = vpop.f32.mrf.mxu0
        %v1117 = vpop.f32.mrf.mxu0
        %1118 = vdwg.mxu0
        %1119 = vrot.lane.b32.xlu0 %v787, 104
        %v1120 = vpop.permute.xlu0 %1119
        %1121 = vrot.lane.b32.xlu0 %v787, 72
        %v1122 = vpop.permute.xlu0 %1121
        %v1124 = vsel %vm791, %v1120, 0
        %v1127 = vsel %vm791, %v1122, 0
        %1129 = vmatprep.subr.bf16.mxu0 0
        %1130 = vmatpush1.bf16.xpose.msra.mxu0 0
        %1131 = vmatprep.subr.bf16.mxu0 0
        %1132 = vmatpush1.bf16.xpose.msra.mxu0 0
        %1133 = vmatprep.subr.bf16.mxu0 0
        %1134 = vmatpush1.bf16.xpose.msra.mxu0 0
        %1135 = vmatprep.subr.bf16.mxu0 0
        %1136 = vmatpush1.bf16.xpose.msra.mxu0 0
        %1137 = vmatprep.subr.bf16.mxu0 0
        %1138 = vmatpush1.bf16.xpose.msra.mxu0 0
        %1139 = vmatprep.subr.bf16.mxu0 0
        %1140 = vmatpush1.bf16.xpose.msra.mxu0 0
        %1141 = vmatprep.subr.bf16.mxu0 0
        %1142 = vmatpush1.bf16.xpose.msra.mxu0 0
        %1143 = vmatprep.subr.bf16.mxu0 0
        %1144 = vmatpush1.bf16.xpose.msra.mxu0 %v1127
        %1145 = vmatprep.subr.bf16.mxu0 0
        %1146 = vmatpush2.bf16.xpose.msra.mxu0 0
        %1147 = vmatprep.subr.bf16.mxu0 0
        %1148 = vmatpush2.bf16.xpose.msra.mxu0 0
        %1149 = vmatprep.subr.bf16.mxu0 0
        %1150 = vmatpush2.bf16.xpose.msra.mxu0 0
        %1151 = vmatprep.subr.bf16.mxu0 0
        %1152 = vmatpush2.bf16.xpose.msra.mxu0 0
        %1153 = vmatprep.subr.bf16.mxu0 0
        %1154 = vmatpush2.bf16.xpose.msra.mxu0 0
        %1155 = vmatprep.subr.bf16.mxu0 0
        %1156 = vmatpush2.bf16.xpose.msra.mxu0 0
        %1157 = vmatprep.subr.bf16.mxu0 0
        %1158 = vmatpush2.bf16.xpose.msra.mxu0 0
        %1159 = vmatprep.subr.bf16.mxu0 0
        %1160 = vmatpush2.bf16.xpose.msra.mxu0 0
        %1161 = vmatprep.mubr.bf16.mxu0 0
        %1162 = vmatmul.mubr.bf16.gmra.mxu0 %v1124
        %v1163 = vpop.f32.mrf.mxu0
        %v1164 = vadd.f32 0.0, %v1163
        %v1165 = vpop.f32.mrf.mxu0
        %v1166 = vpop.f32.mrf.mxu0
        %v1167 = vpop.f32.mrf.mxu0
        %1168 = vdwg.mxu0
        %v1169 = vsel %vm791, %v1164, -inf
        %1170 = vmax.xlane.f32.xlu0 %v1169
        %v1171 = vpop.xlane.xlu0 %1170
        %v1172 = vsub.f32 %v1164, %v1171
        %v1173 = vmul.f32 %v1172, 1.442695
        %v1174 = vpow.pop %v1173
        %v1175 = vsel %vm791, %v1174, 0.0
        %1176 = vadd.xlane.f32.xlu0 %v1175
        %v1177 = vpop.xlane.xlu0 %1176
        %v1178 = vrcp.pop %v1177
        %v1179 = vmul.f32 %v1174, %v1178
        %v1180 = vpack.c.bf16 %v1179, %v1179
        %1181 = vrot.lane.b32.xlu0 %v787, 40
        %v1182 = vpop.permute.xlu0 %1181
        %v1184 = vsel %vm791, %v1180, 0
        %v1187 = vsel %vm855, %v1182, 0
        %1189 = vmatprep.subr.bf16.mxu0 0
        %1190 = vmatpush1.bf16.msra.mxu0 0
        %1191 = vmatprep.subr.bf16.mxu0 0
        %1192 = vmatpush1.bf16.msra.mxu0 0
        %1193 = vmatprep.subr.bf16.mxu0 0
        %1194 = vmatpush1.bf16.msra.mxu0 0
        %1195 = vmatprep.subr.bf16.mxu0 0
        %1196 = vmatpush1.bf16.msra.mxu0 0
        %1197 = vmatprep.subr.bf16.mxu0 0
        %1198 = vmatpush1.bf16.msra.mxu0 0
        %1199 = vmatprep.subr.bf16.mxu0 0
        %1200 = vmatpush1.bf16.msra.mxu0 0
        %1201 = vmatprep.subr.bf16.mxu0 0
        %1202 = vmatpush1.bf16.msra.mxu0 0
        %1203 = vmatprep.subr.bf16.mxu0 0
        %1204 = vmatpush1.bf16.msra.mxu0 %v1187
        %1205 = vmatprep.subr.bf16.mxu0 0
        %1206 = vmatpush2.bf16.msra.mxu0 0
        %1207 = vmatprep.subr.bf16.mxu0 0
        %1208 = vmatpush2.bf16.msra.mxu0 0
        %1209 = vmatprep.subr.bf16.mxu0 0
        %1210 = vmatpush2.bf16.msra.mxu0 0
        %1211 = vmatprep.subr.bf16.mxu0 0
        %1212 = vmatpush2.bf16.msra.mxu0 0
        %1213 = vmatprep.subr.bf16.mxu0 0
        %1214 = vmatpush2.bf16.msra.mxu0 0
        %1215 = vmatprep.subr.bf16.mxu0 0
        %1216 = vmatpush2.bf16.msra.mxu0 0
        %1217 = vmatprep.subr.bf16.mxu0 0
        %1218 = vmatpush2.bf16.msra.mxu0 0
        %1219 = vmatprep.subr.bf16.mxu0 0
        %1220 = vmatpush2.bf16.msra.mxu0 0
        %1221 = vmatprep.mubr.bf16.mxu0 0
        %1222 = vmatmul.mubr.bf16.gmra.mxu0 %v1184
        %v1223 = vpop.f32.mrf.mxu0
        %v1224 = vadd.f32 0.0, %v1223
        %v1225 = vpop.f32.mrf.mxu0
        %v1226 = vpop.f32.mrf.mxu0
        %v1227 = vpop.f32.mrf.mxu0
        %1228 = vdwg.mxu0
        %1230 = vrot.lane.b32.xlu0 %v1004, 8
        %v1231 = vpop.permute.xlu0 %1230
        %1234 = vrot.lane.b32.xlu0 %v1114, 16
        %v1235 = vpop.permute.xlu0 %1234
        %1238 = vrot.lane.b32.xlu0 %v1224, 24
        %v1239 = vpop.permute.xlu0 %1238
        %v1241 = vsel %vm791, %v894, %v1231
        %vm1242 = vcmask 130048
        %v1243 = vsel %vm1242, %v1241, %v1235
        %vm1244 = vcmask 195584
        %v1245 = vsel %vm1244, %v1243, %v1239
        %v1246 = vpack.c.bf16 %v1245, %v1245
        %v1247 = vld [vmem:[%s654] sm:$0xf]
        %v1248 = vld [vmem:[%s654 + $0x4] sm:$0xf]
        %v1249 = vld [vmem:[%s654 + $0x8] sm:$0xf]
        %v1250 = vld [vmem:[%s654 + $0xc] sm:$0xf]
        %v1251 = vld [vmem:[%s657] sm:$0x1]
        %v1253 = vlaneseq
        %v1254 = vshrl.u32 %v1253, 7
        %v1255 = vsub.s32 0, %v1254
        %v1256 = vrot.slane %v1251, %v1255
        %v1262 = vunpack.c.l.b16 %v1247
        %v1263 = vunpack.c.l.b16 %v1248
        %v1264 = vunpack.c.l.b16 %v1249
        %v1265 = vunpack.c.l.b16 %v1250
        %v1266 = vpack.c.b16 %v1263, %v1262
        %v1267 = vpack.c.b16 %v1265, %v1264
        %v1271 = vsel %vm691, %v1246, 0
        %1273 = vmatprep.subr.bf16.mxu0 0
        %1274 = vmatpush1.bf16.msra.mxu0 0
        %1275 = vmatprep.subr.bf16.mxu0 0
        %1276 = vmatpush1.bf16.msra.mxu0 0
        %1277 = vmatprep.subr.bf16.mxu0 0
        %1278 = vmatpush1.bf16.msra.mxu0 0
        %1279 = vmatprep.subr.bf16.mxu0 0
        %1280 = vmatpush1.bf16.msra.mxu0 0
        %1281 = vmatprep.subr.bf16.mxu0 0
        %1282 = vmatpush1.bf16.msra.mxu0 0
        %1283 = vmatprep.subr.bf16.mxu0 0
        %1284 = vmatpush1.bf16.msra.mxu0 0
        %1285 = vmatprep.subr.bf16.mxu0 0
        %1286 = vmatpush1.bf16.msra.mxu0 %v1267
        %1287 = vmatprep.subr.bf16.mxu0 0
        %1288 = vmatpush1.bf16.msra.mxu0 %v1266
        %1289 = vmatprep.subr.bf16.mxu0 0
        %1290 = vmatpush2.bf16.msra.mxu0 0
        %1291 = vmatprep.subr.bf16.mxu0 0
        %1292 = vmatpush2.bf16.msra.mxu0 0
        %1293 = vmatprep.subr.bf16.mxu0 0
        %1294 = vmatpush2.bf16.msra.mxu0 0
        %1295 = vmatprep.subr.bf16.mxu0 0
        %1296 = vmatpush2.bf16.msra.mxu0 0
        %1297 = vmatprep.subr.bf16.mxu0 0
        %1298 = vmatpush2.bf16.msra.mxu0 0
        %1299 = vmatprep.subr.bf16.mxu0 0
        %1300 = vmatpush2.bf16.msra.mxu0 0
        %1301 = vmatprep.subr.bf16.mxu0 0
        %1302 = vmatpush2.bf16.msra.mxu0 0
        %1303 = vmatprep.subr.bf16.mxu0 0
        %1304 = vmatpush2.bf16.msra.mxu0 0
        %1305 = vmatprep.mubr.bf16.mxu0 0
        %1306 = vmatmul.mubr.bf16.gmra.mxu0 %v1271
        %v1307 = vpop.f32.mrf.mxu0
        %v1308 = vadd.f32 %v1256, %v1307
        %v1309 = vpop.f32.mrf.mxu0
        %v1310 = vpop.f32.mrf.mxu0
        %v1311 = vpop.f32.mrf.mxu0
        %1312 = vdwg.mxu0
        %v1313 = vadd.f32 %v688, %v1308
        %v1314 = vld [vmem:[%s660] sm:$0x1]
        %v1315 = vld [vmem:[%s663] sm:$0x1]
        %v1316 = vsel %vm691, %v1313, 0.0
        %1317 = vadd.xlane.f32.xlu0 %v1316
        %v1318 = vpop.xlane.xlu0 %1317
        %v1319 = vmul.f32 %v1318, %v695
        %v1320 = vsub.f32 %v1313, %v1319
        %v1321 = vmul.f32 %v1320, %v1320
        %v1322 = vsel %vm691, %v1321, 0.0
        %1323 = vadd.xlane.f32.xlu0 %v1322
        %v1324 = vpop.xlane.xlu0 %1323
        %v1325 = vmul.f32 %v1324, %v695
        %v1326 = vadd.f32 %v1325, 1e-06
        %v1327 = vrsqrt.pop %v1326
        %v1328 = vmul.f32 %v1320, %v1327
        %v1330 = vlaneseq
        %v1331 = vshrl.u32 %v1330, 7
        %v1332 = vsub.s32 0, %v1331
        %v1333 = vrot.slane %v1314, %v1332
        %v1335 = vmul.f32 %v1328, %v1333
        %v1337 = vlaneseq
        %v1338 = vshrl.u32 %v1337, 7
        %v1339 = vsub.s32 0, %v1338
        %v1340 = vrot.slane %v1315, %v1339
        %v1342 = vadd.f32 %v1335, %v1340
        %v1343 = vpack.c.bf16 %v1342, %v1342
        %v1344 = vld [vmem:[%s668] sm:$0xf]
        %v1345 = vld [vmem:[%s668 + $0x4] sm:$0xf]
        %v1346 = vld [vmem:[%s668 + $0x8] sm:$0xf]
        %v1347 = vld [vmem:[%s668 + $0xc] sm:$0xf]
        %v1348 = vld [vmem:[%s671] sm:$0x1]
        %v1349 = vld [vmem:[%s676] sm:$0xf]
        %v1350 = vld [vmem:[%s676 + $0x4] sm:$0xf]
        %v1351 = vld [vmem:[%s676 + $0x8] sm:$0xf]
        %v1352 = vld [vmem:[%s676 + $0xc] sm:$0xf]
        %v1353 = vld [vmem:[%s676 + $0x10] sm:$0xf]
        %v1354 = vld [vmem:[%s676 + $0x14] sm:$0xf]
        %v1355 = vld [vmem:[%s676 + $0x18] sm:$0xf]
        %v1356 = vld [vmem:[%s676 + $0x1c] sm:$0xf]
        %v1358 = vlaneseq
        %v1359 = vshrl.u32 %v1358, 7
        %v1360 = vsub.s32 0, %v1359
        %v1361 = vrot.slane %v1348, %v1360
        %v1367 = vunpack.c.l.b16 %v1344
        %v1368 = vunpack.c.l.b16 %v1345
        %v1369 = vunpack.c.l.b16 %v1346
        %v1370 = vunpack.c.l.b16 %v1347
        %v1371 = vpack.c.b16 %v1368, %v1367
        %v1372 = vpack.c.b16 %v1370, %v1369
        %v1376 = vsel %vm691, %v1343, 0
        %1378 = vmatprep.subr.bf16.mxu0 0
        %1379 = vmatpush1.bf16.msra.mxu0 0
        %1380 = vmatprep.subr.bf16.mxu0 0
        %1381 = vmatpush1.bf16.msra.mxu0 0
        %1382 = vmatprep.subr.bf16.mxu0 0
        %1383 = vmatpush1.bf16.msra.mxu0 0
        %1384 = vmatprep.subr.bf16.mxu0 0
        %1385 = vmatpush1.bf16.msra.mxu0 0
        %1386 = vmatprep.subr.bf16.mxu0 0
        %1387 = vmatpush1.bf16.msra.mxu0 0
        %1388 = vmatprep.subr.bf16.mxu0 0
        %1389 = vmatpush1.bf16.msra.mxu0 0
        %1390 = vmatprep.subr.bf16.mxu0 0
        %1391 = vmatpush1.bf16.msra.mxu0 %v1372
        %1392 = vmatprep.subr.bf16.mxu0 0
        %1393 = vmatpush1.bf16.msra.mxu0 %v1371
        %1394 = vmatprep.subr.bf16.mxu0 0
        %1395 = vmatpush2.bf16.msra.mxu0 0
        %1396 = vmatprep.subr.bf16.mxu0 0
        %1397 = vmatpush2.bf16.msra.mxu0 0
        %1398 = vmatprep.subr.bf16.mxu0 0
        %1399 = vmatpush2.bf16.msra.mxu0 0
        %1400 = vmatprep.subr.bf16.mxu0 0
        %1401 = vmatpush2.bf16.msra.mxu0 0
        %1402 = vmatprep.subr.bf16.mxu0 0
        %1403 = vmatpush2.bf16.msra.mxu0 0
        %1404 = vmatprep.subr.bf16.mxu0 0
        %1405 = vmatpush2.bf16.msra.mxu0 0
        %1406 = vmatprep.subr.bf16.mxu0 0
        %1407 = vmatpush2.bf16.msra.mxu0 0
        %1408 = vmatprep.subr.bf16.mxu0 0
        %1409 = vmatpush2.bf16.msra.mxu0 0
        %1410 = vmatprep.mubr.bf16.mxu0 0
        %1411 = vmatmul.mubr.bf16.gmra.mxu0 %v1376
        %v1412 = vpop.f32.mrf.mxu0
        %v1413 = vadd.f32 %v1361, %v1412
        %v1414 = vpop.f32.mrf.mxu0
        %v1415 = vpop.f32.mrf.mxu0
        %v1416 = vpop.f32.mrf.mxu0
        %1417 = vdwg.mxu0
        %v1418 = vmul.f32 %v1413, 0.5
        %v1419 = vmul.f32 %v1413, 0.044715
        %v1420 = vmul.f32 %v1419, %v1413
        %v1421 = vmul.f32 %v1420, %v1413
        %v1422 = vadd.f32 %v1413, %v1421
        %v1423 = vmul.f32 %v1422, 0.7978846
        %v1424 = vtanh.pop %v1423
        %v1425 = vadd.f32 %v1424, 1.0
        %v1426 = vmul.f32 %v1418, %v1425
        %v1427 = vpack.c.bf16 %v1426, %v1426
        %v1428 = vld [vmem:[%s679] sm:$0x1]
        %v1430 = vlaneseq
        %v1431 = vshrl.u32 %v1430, 7
        %v1432 = vsub.s32 0, %v1431
        %v1433 = vrot.slane %v1428, %v1432
        %v1443 = vunpack.c.l.b16 %v1349
        %v1444 = vunpack.c.l.b16 %v1350
        %v1445 = vunpack.c.l.b16 %v1351
        %v1446 = vunpack.c.l.b16 %v1352
        %v1447 = vunpack.c.l.b16 %v1353
        %v1448 = vunpack.c.l.b16 %v1354
        %v1449 = vunpack.c.l.b16 %v1355
        %v1450 = vunpack.c.l.b16 %v1356
        %v1451 = vpack.c.b16 %v1444, %v1443
        %v1452 = vpack.c.b16 %v1446, %v1445
        %v1453 = vpack.c.b16 %v1448, %v1447
        %v1454 = vpack.c.b16 %v1450, %v1449
        %vm1459 = vcmask 523264
        %v1461 = vsel %vm1459, %v1427, 0
        %1463 = vmatprep.subr.bf16.mxu0 0
        %1464 = vmatpush1.bf16.msra.mxu0 0
        %1465 = vmatprep.subr.bf16.mxu0 0
        %1466 = vmatpush1.bf16.msra.mxu0 0
        %1467 = vmatprep.subr.bf16.mxu0 0
        %1468 = vmatpush1.bf16.msra.mxu0 0
        %1469 = vmatprep.subr.bf16.mxu0 0
        %1470 = vmatpush1.bf16.msra.mxu0 0
        %1471 = vmatprep.subr.bf16.mxu0 0
        %1472 = vmatpush1.bf16.msra.mxu0 %v1454
        %1473 = vmatprep.subr.bf16.mxu0 0
        %1474 = vmatpush1.bf16.msra.mxu0 %v1453
        %1475 = vmatprep.subr.bf16.mxu0 0
        %1476 = vmatpush1.bf16.msra.mxu0 %v1452
        %1477 = vmatprep.subr.bf16.mxu0 0
        %1478 = vmatpush1.bf16.msra.mxu0 %v1451
        %1479 = vmatprep.subr.bf16.mxu0 0
        %1480 = vmatpush2.bf16.msra.mxu0 0
        %1481 = vmatprep.subr.bf16.mxu0 0
        %1482 = vmatpush2.bf16.msra.mxu0 0
        %1483 = vmatprep.subr.bf16.mxu0 0
        %1484 = vmatpush2.bf16.msra.mxu0 0
        %1485 = vmatprep.subr.bf16.mxu0 0
        %1486 = vmatpush2.bf16.msra.mxu0 0
        %1487 = vmatprep.subr.bf16.mxu0 0
        %1488 = vmatpush2.bf16.msra.mxu0 0
        %1489 = vmatprep.subr.bf16.mxu0 0
        %1490 = vmatpush2.bf16.msra.mxu0 0
        %1491 = vmatprep.subr.bf16.mxu0 0
        %1492 = vmatpush2.bf16.msra.mxu0 0
        %1493 = vmatprep.subr.bf16.mxu0 0
        %1494 = vmatpush2.bf16.msra.mxu0 0
        %1495 = vmatprep.mubr.bf16.mxu0 0
        %1496 = vmatmul.mubr.bf16.gmra.mxu0 %v1461
        %v1497 = vpop.f32.mrf.mxu0
        %v1498 = vadd.f32 %v1433, %v1497
        %v1499 = vpop.f32.mrf.mxu0
        %v1500 = vpop.f32.mrf.mxu0
        %v1501 = vpop.f32.mrf.mxu0
        %1502 = vdwg.mxu0
        %v1503 = vadd.f32 %v1313, %v1498
        %1504 = vst.msk [vmem:[%s638] sm:$0xff] %vm691, %v1503
        %s1505 = sand.u32 %s391, 1
        %s1506 = scalar_lea.sflag [#allocation4], %s1505
        %s1507 = sand.u32 %s391, 1
        %s1508 = smul.addr %s1507, 8
        %s1509 = scalar_lea.vmem [#allocation7], %s1508
        // Predicated region
        $region85: #{tpu_custom_call.1} parent=71 // pred_check
          %p1510 = pneg %p401
        $region86: #{tpu_custom_call.1} parent=71 // pred_check_branch
          %1512 = sbr.rel (%p1510) target = $region88
        $region87: #{tpu_custom_call.1} parent=71 // pred_region
          %s1514 = ssub.s32 128, 128
          %1515 = vsyncadd %s1506, %s1514
          %s1516 = smul.addr %s37, 128
          %s1517 = scalar_lea.hbm %s13, %s1516
          %s1519 = sshll.u32 %s1509, 4
          %s1520 = int_to_ptr.vmem [resolvable:$true] %s1519
          %1522 = dma.vmem_to_hbm [thread:$0]  %s1520, 128, %s1517, %s1506
        $region88: #{tpu_custom_call.1} parent=71 // pred_fallthru
          _
      $region72: #{tpu_custom_call.1} parent=5 // pred_fallthru
        _
      %p1523 = scmp.le.s32.totalorder 2, %s28
      // Predicated region
      $region89: #{tpu_custom_call.1} parent=5 // pred_check
        %p1524 = pneg %p1523
      $region90: #{tpu_custom_call.1} parent=5 // pred_check_branch
        %1526 = sbr.rel (%p1524) target = $region92
      $region91: #{tpu_custom_call.1} parent=5 // pred_region
        %s1527 = ssub.s32 %s28, 2
        // Predicated region
        $region93: #{tpu_custom_call.1} parent=91 // pred_check
          %p1528 = pneg %p407
        $region94: #{tpu_custom_call.1} parent=91 // pred_check_branch
          %1530 = sbr.rel (%p1528) target = $region96
        $region95: #{tpu_custom_call.1} parent=91 // pred_region
          %s1531 = sand.u32 %s392, 1
          %s1532 = scalar_lea.sflag [#allocation4], %s1531
          %s1533 = sand.u32 %s392, 1
          %s1534 = smul.addr %s1533, 8
          %s1535 = scalar_lea.vmem [#allocation7], %s1534
          %1536 = dma.done %s1532, 128
        $region96: #{tpu_custom_call.1} parent=91 // pred_fallthru
          _
      $region92: #{tpu_custom_call.1} parent=5 // pred_fallthru
        _
    $region6: #{tpu_custom_call.1} parent=1 // loop_footer
      %s32 = sadd.s32 1, %s28
    $region7: #{tpu_custom_call.1} parent=1 // loop_footer_branch
      %27 = sbr.rel target = $region3
    $region8: #{tpu_custom_call.1} parent=1 // loop_exit
      _
    %1537 = vsyncpa [#allocation3], 1
    %s1538 = scalar_lea.sflag [#allocation3], 1
    %1539 = vsyncpa %s1538, 1
    %1540 = vsyncpa [#allocation6], 1
    %s1541 = scalar_lea.sflag [#allocation6], 1
    %1542 = vsyncpa %s1541, 1
    %1543 = vsyncpa [#allocation4], 1
    %s1544 = scalar_lea.sflag [#allocation4], 1
    %1545 = vsyncpa %s1544, 1

</llo_original>
